<compile_context>
chip_gen: v5e
topology: v5e:2x2
jax: 0.10.0
libtpu: 0.0.40
codegen_flags: <defaults>
</compile_context>

<pallas_src>
import jax
import jax.numpy as jnp
from jax import lax
from jax.experimental import pallas as pl
from jax.experimental.pallas import tpu as pltpu


# --------------------------------------------------------------------------------------
# Kernels
# --------------------------------------------------------------------------------------
def lin1_relu_norm_kernel(x_ref, w1_ref, b1_ref, h_ref, hn_ref, hnT_ref):
    """h = relu(x @ w1 + b1); hn = row-L2-normalized h; also emit hn^T (keys layout)."""
    h = jnp.dot(x_ref[...], w1_ref[...], preferred_element_type=jnp.float32) + b1_ref[...]
    h = jnp.maximum(h, 0.0)
    h_ref[...] = h
    ss = jnp.sum(h * h, axis=-1, keepdims=True)
    # rsqrt(max(ss, eps^2)) == 1 / max(||h||, eps)  (PyG F.normalize, eps=1e-12)
    hn = h * lax.rsqrt(jnp.maximum(ss, 1e-24))
    hn_ref[...] = hn
    hnT_ref[...] = hn.T          # one transpose per target tile (hoisted out of the k loop)


def _online_softmax_step(beta_ref, q_ref, kT_ref, h_ref, adj_ref, m_sc, l_sc, acc_sc):
    """One source-chunk step of the masked, online-softmax AGNN propagation."""
    k = pl.program_id(1)

    @pl.when(k == 0)
    def _():
        m_sc[...] = jnp.full_like(m_sc, -jnp.inf)
        l_sc[...] = jnp.zeros_like(l_sc)
        acc_sc[...] = jnp.zeros_like(acc_sc)

    # Fold beta into the small [TN, HP] query tile, not the [TN, TK] score matrix.
    q = q_ref[...] * beta_ref[0]
    # Canonical [TN,HP] @ [HP,TK] — keys already supplied transposed, no XLU per step.
    s = jnp.dot(q, kT_ref[...], preferred_element_type=jnp.float32)
    # int8 adjacency chunk -> in-kernel mask (quarter the HBM traffic of an f32 mask).
    s = jnp.where(adj_ref[...] != 0, s, -1e30)

    m_new = jnp.maximum(m_sc[...], jnp.max(s, axis=-1, keepdims=True))
    alpha = jnp.exp(m_sc[...] - m_new)
    p = jnp.exp(s - m_new)                       # masked entries flush to exactly 0 (f32)
    l_sc[...] = alpha * l_sc[...] + jnp.sum(p, axis=-1, keepdims=True)
    acc_sc[...] = alpha * acc_sc[...] + jnp.dot(p, h_ref[...],
                                                preferred_element_type=jnp.float32)
    m_sc[...] = m_new


def agnn_flash_kernel(beta_ref, q_ref, kT_ref, h_ref, adj_ref,
                      ho_ref, hno_ref, hnTo_ref, m_sc, l_sc, acc_sc):
    """AGNN layer with online softmax; also emits normalized features (both layouts)."""
    _online_softmax_step(beta_ref, q_ref, kT_ref, h_ref, adj_ref, m_sc, l_sc, acc_sc)

    @pl.when(pl.program_id(1) == pl.num_programs(1) - 1)
    def _():
        h_new = acc_sc[...] * (1.0 / l_sc[...])      # exact denominator (once per tile)
        ho_ref[...] = h_new
        ss = jnp.sum(h_new * h_new, axis=-1, keepdims=True)
        hn_new = h_new * lax.rsqrt(jnp.maximum(ss, 1e-24))
        hno_ref[...] = hn_new
        hnTo_ref[...] = hn_new.T


def agnn_lin2_logsoftmax_kernel(beta_ref, q_ref, kT_ref, h_ref, adj_ref, w2_ref, b2_ref,
                                out_ref, m_sc, l_sc, acc_sc):
    """Second AGNN layer fused with lin2 + log_softmax (no wasted hn outputs)."""
    _online_softmax_step(beta_ref, q_ref, kT_ref, h_ref, adj_ref, m_sc, l_sc, acc_sc)

    @pl.when(pl.program_id(1) == pl.num_programs(1) - 1)
    def _():
        h_new = acc_sc[...] * (1.0 / l_sc[...])
        z = jnp.dot(h_new, w2_ref[...], preferred_element_type=jnp.float32) + b2_ref[...]
        mz = jnp.max(z, axis=-1, keepdims=True)
        out_ref[...] = z - (jnp.log(jnp.sum(jnp.exp(z - mz), axis=-1, keepdims=True)) + mz)


# --------------------------------------------------------------------------------------
# Wrapper
# --------------------------------------------------------------------------------------
def _round_up(x, m):
    return ((x + m - 1) // m) * m


def net_forward(x, adj, w1, b1, w2, b2, betas, *, block=256):
    """adj[i, j] = 1 iff edge j -> i (no self-loops needed; they are added here, matching
    PyG AGNNConv's add_self_loops=True)."""
    N, F = x.shape
    H = w1.shape[1]
    C = w2.shape[1]
    f32 = jnp.float32

    # Lane-dense padding of every axis that hits a lane dimension; zero columns are inert
    # for the L2 norm / dot products; padded classes get bias -1e30 so log_softmax ignores
    # them; padded nodes get a self-loop so their (discarded) softmax rows stay finite.
    HP = _round_up(max(H, 128), 128)
    CP = _round_up(max(C, 128), 128)
    FP = _round_up(F, 128)
    NP = _round_up(N, block)
    TN = TK = block

    w1p = jnp.zeros((FP, HP), f32).at[:F, :H].set(w1.astype(f32))
    b1p = jnp.zeros((1, HP), f32).at[:, :H].set(b1.astype(f32))
    w2p = jnp.zeros((HP, CP), f32).at[:H, :C].set(w2.astype(f32))
    b2p = jnp.full((1, CP), -1e30, f32).at[:, :C].set(b2.astype(f32))

    xp = jnp.zeros((NP, FP), f32).at[:N, :F].set(x.astype(f32))

    # int8 adjacency (streamed per [TN, TK] chunk), self-loops on every row (incl. padded).
    adj8 = jnp.zeros((NP, NP), jnp.int8).at[:N, :N].set(adj.astype(jnp.int8))
    idx = jnp.arange(NP)
    adj8 = adj8.at[idx, idx].set(1)

    grid1 = (NP // TN,)
    grid2 = (NP // TN, NP // TK)
    params1 = pltpu.CompilerParams(dimension_semantics=("parallel",))
    params2 = pltpu.CompilerParams(dimension_semantics=("parallel", "arbitrary"))
    smem = pl.BlockSpec(memory_space=pltpu.MemorySpace.SMEM)

    # ---- lin1 + ReLU + normalize ---------------------------------------------------------
    h, hn, hnT = pl.pallas_call(
        lin1_relu_norm_kernel,
        out_shape=(jax.ShapeDtypeStruct((NP, HP), f32),
                   jax.ShapeDtypeStruct((NP, HP), f32),
                   jax.ShapeDtypeStruct((HP, NP), f32)),
        grid=grid1,
        in_specs=[pl.BlockSpec((TN, FP), lambda i: (i, 0)),
                  pl.BlockSpec((FP, HP), lambda i: (0, 0)),
                  pl.BlockSpec((1, HP), lambda i: (0, 0))],
        out_specs=(pl.BlockSpec((TN, HP), lambda i: (i, 0)),
                   pl.BlockSpec((TN, HP), lambda i: (i, 0)),
                   pl.BlockSpec((HP, TN), lambda i: (0, i))),
        compiler_params=params1,
    )(xp, w1p, b1p)

    def scratch():
        return [pltpu.VMEM((TN, 1), f32),      # running max
                pltpu.VMEM((TN, 1), f32),      # running sum
                pltpu.VMEM((TN, HP), f32)]     # running weighted-value accumulator

    # ---- AGNN layer 1 (flash-style, outputs features + normalized features) --------------
    h, hn2, hnT2 = pl.pallas_call(
        agnn_flash_kernel,
        out_shape=(jax.ShapeDtypeStruct((NP, HP), f32),
                   jax.ShapeDtypeStruct((NP, HP), f32),
                   jax.ShapeDtypeStruct((HP, NP), f32)),
        grid=grid2,
        in_specs=[smem,                                          # beta scalar
                  pl.BlockSpec((TN, HP), lambda i, k: (i, 0)),   # queries (target rows)
                  pl.BlockSpec((HP, TK), lambda i, k: (0, k)),   # keys^T source chunk
                  pl.BlockSpec((TK, HP), lambda i, k: (k, 0)),   # values source chunk
                  pl.BlockSpec((TN, TK), lambda i, k: (i, k))],  # int8 adjacency chunk
        out_specs=(pl.BlockSpec((TN, HP), lambda i, k: (i, 0)),
                   pl.BlockSpec((TN, HP), lambda i, k: (i, 0)),
                   pl.BlockSpec((HP, TN), lambda i, k: (0, i))),
        scratch_shapes=scratch(),
        compiler_params=params2,
    )(betas[0:1], hn, hnT, h, adj8)

    # ---- AGNN layer 2 fused with lin2 + log_softmax ---------------------------------------
    out_padded = pl.pallas_call(
        agnn_lin2_logsoftmax_kernel,
        out_shape=jax.ShapeDtypeStruct((NP, CP), f32),
        grid=grid2,
        in_specs=[smem,
                  pl.BlockSpec((TN, HP), lambda i, k: (i, 0)),
                  pl.BlockSpec((HP, TK), lambda i, k: (0, k)),
                  pl.BlockSpec((TK, HP), lambda i, k: (k, 0)),
                  pl.BlockSpec((TN, TK), lambda i, k: (i, k)),
                  pl.BlockSpec((HP, CP), lambda i, k: (0, 0)),
                  pl.BlockSpec((1, CP), lambda i, k: (0, 0))],
        out_specs=pl.BlockSpec((TN, CP), lambda i, k: (i, 0)),
        scratch_shapes=scratch(),
        compiler_params=params2,
    )(betas[1:2], hn2, hnT2, h, adj8, w2p, b2p)

    return out_padded[:N, :C]


# --------------------------------------------------------------------------------------
# Pure-JAX reference
# --------------------------------------------------------------------------------------
def reference_forward(x, adj, w1, b1, w2, b2, betas):
    N = x.shape[0]
    adj = jnp.maximum(adj, jnp.eye(N, dtype=adj.dtype))   # AGNNConv adds self-loops
    h = jnp.maximum(x @ w1 + b1, 0.0)
    for beta in betas:
        hn = h / jnp.maximum(jnp.linalg.norm(h, axis=-1, keepdims=True), 1e-12)
        s = jnp.where(adj > 0, beta * (hn @ hn.T), -jnp.inf)
        a = jax.nn.softmax(s, axis=-1)
        h = a @ h
    z = h @ w2 + b2
    return jax.nn.log_softmax(z, axis=1)


if __name__ == "__main__":
    # Small synthetic "Planetoid-like" graph; N and F deliberately NOT multiples of the
    # tile sizes so the wrapper's padding + 3x3 attention grid are exercised.
    N, F, H, C, E = 600, 200, 16, 7, 4096

    key = jax.random.PRNGKey(0)
    kx, ke, kw1, kb1, kw2, kb2 = jax.random.split(key, 6)

    # Node features (row-normalized, like T.NormalizeFeatures()).
    x = jax.random.uniform(kx, (N, F), jnp.float32)
    x = x / jnp.maximum(jnp.sum(x, axis=-1, keepdims=True), 1e-12)

    # Random edge_index [2, E] (row 0 = source, row 1 = target) as a dense adjacency mask
    # adj[target, source]; self-loops are added inside the model (AGNNConv semantics).
    edge_index = jax.random.randint(ke, (2, E), 0, N)
    src, dst = edge_index[0], edge_index[1]
    adj = jnp.zeros((N, N), jnp.float32).at[dst, src].set(1.0)

    # Deterministic parameter init (PyTorch Linear-style uniform), stored as [in, out].
    bnd1 = 1.0 / (F ** 0.5)
    w1 = jax.random.uniform(kw1, (F, H), jnp.float32, -bnd1, bnd1)
    b1 = jax.random.uniform(kb1, (1, H), jnp.float32, -bnd1, bnd1)
    bnd2 = 1.0 / (H ** 0.5)
    w2 = jax.random.uniform(kw2, (H, C), jnp.float32, -bnd2, bnd2)
    b2 = jax.random.uniform(kb2, (1, C), jnp.float32, -bnd2, bnd2)

    # prop1: requires_grad=False -> beta fixed 1.0; prop2: learnable (init 1.0).
    betas = jnp.array([1.0, 1.0], jnp.float32)

    out = net_forward(x, adj, w1, b1, w2, b2, betas)
    out = jax.block_until_ready(out)

    ref = reference_forward(x, adj, w1, b1, w2, b2, betas)
    assert out.shape == (N, C)
    assert jnp.allclose(out, ref, atol=1e-4, rtol=1e-4), "mismatch vs JAX reference"

    print("KERNEL_OK")
</pallas_src>

<mosaic_0001>
module attributes {stable_mosaic.version = 11 : i64} {
  func.func @lin1_relu_norm_kernel(%arg0: i32, %arg1: memref<256x256xf32, #tpu.memory_space<vmem>>, %arg2: memref<256x128xf32, #tpu.memory_space<vmem>>, %arg3: memref<1x128xf32, #tpu.memory_space<vmem>>, %arg4: memref<256x128xf32, #tpu.memory_space<vmem>>, %arg5: memref<256x128xf32, #tpu.memory_space<vmem>>, %arg6: memref<128x256xf32, #tpu.memory_space<vmem>>) attributes {dimension_semantics = [#tpu.dimension_semantics<parallel>], iteration_bounds = array<i64: 3>, scalar_prefetch = 0 : i64, scratch_operands = 0 : i64, tpu.core_type = #tpu.core_type<tc>, window_params = [{transform_indices = @transform_0, window_bounds = array<i64: 256, 256>}, {pipeline_mode = #tpu.pipeline_mode<synchronous>, transform_indices = @transform_1, window_bounds = array<i64: 256, 128>}, {pipeline_mode = #tpu.pipeline_mode<synchronous>, transform_indices = @transform_2, window_bounds = array<i64: 1, 128>}, {transform_indices = @transform_3, window_bounds = array<i64: 256, 128>}, {transform_indices = @transform_4, window_bounds = array<i64: 256, 128>}, {transform_indices = @transform_5, window_bounds = array<i64: 128, 256>}]} {
    %c0 = arith.constant 0 : index
    %c0_0 = arith.constant 0 : index
    %0 = vector.load %arg1[%c0, %c0_0] : memref<256x256xf32, #tpu.memory_space<vmem>>, vector<256x256xf32>
    %c0_1 = arith.constant 0 : index
    %c0_2 = arith.constant 0 : index
    %1 = vector.load %arg2[%c0_1, %c0_2] : memref<256x128xf32, #tpu.memory_space<vmem>>, vector<256x128xf32>
    %cst = arith.constant dense<0.000000e+00> : vector<256x128xf32>
    %2 = tpu.matmul %0, %1, %cst {dimension_numbers = #tpu.dot_dimension_numbers<[1], [0], [0], [1], [0, 0, 1, 1], [], []>} : vector<256x256xf32>, vector<256x128xf32>, vector<256x128xf32> -> vector<256x128xf32>
    %c0_3 = arith.constant 0 : index
    %c0_4 = arith.constant 0 : index
    %3 = vector.load %arg3[%c0_3, %c0_4] : memref<1x128xf32, #tpu.memory_space<vmem>>, vector<1x128xf32>
    %4 = vector.broadcast %3 : vector<1x128xf32> to vector<256x128xf32>
    %5 = arith.addf %2, %4 : vector<256x128xf32>
    %cst_5 = arith.constant 0.000000e+00 : f32
    %6 = vector.broadcast %cst_5 : f32 to vector<256x128xf32>
    %7 = arith.maximumf %5, %6 : vector<256x128xf32>
    %c0_6 = arith.constant 0 : index
    %c0_7 = arith.constant 0 : index
    %8 = vector.load %arg4[%c0_6, %c0_7] : memref<256x128xf32, #tpu.memory_space<vmem>>, vector<256x128xf32>
    tpu.vector_store %arg4[%c0_6, %c0_7], %7 {strides = array<i32>} : memref<256x128xf32, #tpu.memory_space<vmem>>, vector<256x128xf32>,
    %9 = arith.mulf %7, %7 : vector<256x128xf32>
    %cst_8 = arith.constant dense<0.000000e+00> : vector<256xf32>
    %10 = vector.multi_reduction <add>, %9, %cst_8 [1] : vector<256x128xf32> to vector<256xf32>
    %11 = vector.shape_cast %10 : vector<256xf32> to vector<256x1xf32>
    %cst_9 = arith.constant 1.000000e-24 : f32
    %12 = vector.broadcast %cst_9 : f32 to vector<256x1xf32>
    %13 = arith.maximumf %11, %12 : vector<256x1xf32>
    %14 = math.rsqrt %13 : vector<256x1xf32>
    %15 = vector.broadcast %14 : vector<256x1xf32> to vector<256x128xf32>
    %16 = arith.mulf %7, %15 : vector<256x128xf32>
    %c0_10 = arith.constant 0 : index
    %c0_11 = arith.constant 0 : index
    %17 = vector.load %arg5[%c0_10, %c0_11] : memref<256x128xf32, #tpu.memory_space<vmem>>, vector<256x128xf32>
    tpu.vector_store %arg5[%c0_10, %c0_11], %16 {strides = array<i32>} : memref<256x128xf32, #tpu.memory_space<vmem>>, vector<256x128xf32>,
    %18 = tpu.transpose %16, [1, 0] : vector<256x128xf32> -> vector<128x256xf32>
    %c0_12 = arith.constant 0 : index
    %c0_13 = arith.constant 0 : index
    %19 = vector.load %arg6[%c0_12, %c0_13] : memref<128x256xf32, #tpu.memory_space<vmem>>, vector<128x256xf32>
    tpu.vector_store %arg6[%c0_12, %c0_13], %18 {strides = array<i32>} : memref<128x256xf32, #tpu.memory_space<vmem>>, vector<128x256xf32>,
    return
  }
  func.func @transform_0(%arg0: i32) -> (i32, i32) {
    %c0_i32 = arith.constant 0 : i32
    %c0_i32_0 = arith.constant 0 : i32
    return %arg0, %c0_i32 : i32, i32
  }
  func.func @transform_1(%arg0: i32) -> (i32, i32) {
    %c0_i32 = arith.constant 0 : i32
    %c0_i32_0 = arith.constant 0 : i32
    %c0_i32_1 = arith.constant 0 : i32
    return %c0_i32, %c0_i32_0 : i32, i32
  }
  func.func @transform_2(%arg0: i32) -> (i32, i32) {
    %c0_i32 = arith.constant 0 : i32
    %c0_i32_0 = arith.constant 0 : i32
    %c0_i32_1 = arith.constant 0 : i32
    return %c0_i32, %c0_i32_0 : i32, i32
  }
  func.func @transform_3(%arg0: i32) -> (i32, i32) {
    %c0_i32 = arith.constant 0 : i32
    %c0_i32_0 = arith.constant 0 : i32
    return %arg0, %c0_i32 : i32, i32
  }
  func.func @transform_4(%arg0: i32) -> (i32, i32) {
    %c0_i32 = arith.constant 0 : i32
    %c0_i32_0 = arith.constant 0 : i32
    return %arg0, %c0_i32 : i32, i32
  }
  func.func @transform_5(%arg0: i32) -> (i32, i32) {
    %c0_i32 = arith.constant 0 : i32
    %c0_i32_0 = arith.constant 0 : i32
    return %c0_i32, %arg0 : i32, i32
  }
}

</mosaic_0001>

<llo_original>
// kernel: tpu_custom_call.1
$region0: #{tpu_custom_call.1}
  #allocation0 [shape = 'u32[]', space=smem, size = 0x4, offset = 0x4, fixed_abs, tag = 'smem constant byte address 0x4 - core index']
  #allocation1 [shape = 'u32[72,128]{1,0:T(1,128)}', space=vmem, size = 0x9000, scoped, tag = 'internal scratch']
  %s0 = inlined_call_operand.hbm [shape: f32[768,256], index: 0, kind: input, shape index: {}]
  %s1 = inlined_call_operand.hbm [shape: f32[256,128], index: 1, kind: input, shape index: {}]
  %s2 = inlined_call_operand.vmem [shape: f32[1,128], index: 2, kind: input, shape index: {}]
  %s3 = inlined_call_operand.hbm [shape: f32[768,128], index: 3, kind: output, shape index: {0}]
  %s4 = inlined_call_operand.hbm [shape: f32[768,128], index: 4, kind: output, shape index: {1}]
  %s5 = inlined_call_operand.hbm [shape: f32[128,768], index: 5, kind: output, shape index: {2}]
  %6 = xla_tuple %s3, %s4, %s5
  %s7 = sld [smem:[#allocation0]]
  $region69: #{tpu_custom_call.1} parent=0
    _
  %s9 = ssub.s32 1, %s7
  %s10 = scalar_select 0, %s9, %s7
  $region1: #{tpu_custom_call.1} parent=0
    #allocation2 [shape = 'u8[524288]{0}', space=vmem, size = 0x80000, scoped, tag = 'input window, operand 0']
    #allocation3 [shape = 's32[2]{0}', space=sflag, size = 0x8, scoped, tag = 'scoped memory for tpu_custom_call.1']
    #allocation4 [shape = 's32[2]{0}', space=sflag, size = 0x8, scoped, tag = 'scoped memory for tpu_custom_call.1']
    #allocation5 [shape = 'u8[131072]{0}', space=vmem, size = 0x20000, scoped, tag = 'input window, operand 1, single buffered']
    #allocation6 [shape = 's32[1]{0}', space=sflag, size = 0x4, scoped, tag = 'scoped memory for tpu_custom_call.1']
    #allocation7 [shape = 'u8[262144]{0}', space=vmem, size = 0x40000, scoped, tag = 'output window, operand 0']
    #allocation8 [shape = 'u8[262144]{0}', space=vmem, size = 0x40000, scoped, tag = 'output window, operand 1']
    #allocation9 [shape = 's32[2]{0}', space=sflag, size = 0x8, scoped, tag = 'scoped memory for tpu_custom_call.1']
    #allocation10 [shape = 'u8[262144]{0}', space=vmem, size = 0x40000, scoped, tag = 'output window, operand 2']
    %11 = vsyncpa [#allocation3], 0
    %s12 = scalar_lea.sflag [#allocation3], 1
    %13 = vsyncpa %s12, 0
    %14 = vsyncpa [#allocation6], 0
    %15 = vsyncpa [#allocation4], 0
    %s16 = scalar_lea.sflag [#allocation4], 1
    %17 = vsyncpa %s16, 0
    %18 = vsyncpa [#allocation9], 0
    %s19 = scalar_lea.sflag [#allocation9], 1
    %20 = vsyncpa %s19, 0
    loop: start=0, step=1, limit=5
    $region2: #{tpu_custom_call.1} parent=1 // loop_pre_header
      _
    $region3: #{tpu_custom_call.1} parent=1 // loop_header
      %s22 = sphi 0, %s26
      %p23 = scmp.ge.s32.totalorder %s22, 5
      %s32 = sphi 0, %s34
      %s35 = sphi 0, %s32
      %s36 = sphi 0, %s35
      %s52 = sphi 0, %s36
      %s56 = sphi 0, %s56
      %s58 = sphi 0, %s56
      %s59 = sphi 0, %s58
      %s73 = sphi 0, %s59
      %s77 = sphi 0, %s77
      %s79 = sphi 0, %s77
      %s80 = sphi 0, %s79
      %s94 = sphi 0, %s80
      %s100 = sphi 0, %s102
      %s103 = sphi 0, %s100
      %s104 = sphi 0, %s103
      %s120 = sphi 0, %s104
      %s126 = sphi 0, %s128
      %s129 = sphi 0, %s126
      %s130 = sphi 0, %s129
      %s146 = sphi 0, %s130
      %s152 = sphi 0, %s154
      %s155 = sphi 0, %s152
      %s156 = sphi 0, %s155
      %s172 = sphi 0, %s156
    $region4: #{tpu_custom_call.1} parent=1 // loop_header_branch
      %25 = sbr.rel (%p23) target = $region8
    $region5: #{tpu_custom_call.1} parent=1 // loop_body
      %s27 = ssub.s32 %s22, 1
      %s28 = ssub.s32 %s22, 2
      %s29 = sadd.s32 %s22, 1
      %s30 = ssub.s32 %s22, %s29
      %p31 = scmp.eq.s32.totalorder %s30, 0
      %s33 = sadd.s32 %s32, 1
      %s34 = scalar_select %p31, %s32, %s33
      %p37 = pneg %p31
      %p38 = scmp.eq.s32.totalorder %s22, 2
      %p39 = por %p37, %p38
      %p40 = scmp.ne.s32.totalorder %s32, %s35
      %p41 = scmp.eq.s32.totalorder %s22, 0
      %p42 = por %p40, %p41
      %p43 = scmp.ne.s32.totalorder %s32, %s35
      %p44 = scmp.eq.s32.totalorder %s27, 2
      %p45 = por %p43, %p44
      %p46 = scmp.ne.s32.totalorder %s35, %s36
      %p47 = scmp.eq.s32.totalorder %s27, 0
      %p48 = por %p46, %p47
      %p49 = scmp.ne.s32.totalorder %s35, %s36
      %p50 = scmp.eq.s32.totalorder %s28, 2
      %p51 = por %p49, %p50
      %p53 = scmp.ne.s32.totalorder %s36, %s52
      %p54 = scmp.eq.s32.totalorder %s28, 0
      %p55 = por %p53, %p54
      %s57 = sadd.s32 %s56, 1
      %p60 = scmp.eq.s32.totalorder %s22, 2
      %p61 = scmp.ne.s32.totalorder %s56, %s58
      %p62 = scmp.eq.s32.totalorder %s22, 0
      %p63 = por %p61, %p62
      %p64 = scmp.ne.s32.totalorder %s56, %s58
      %p65 = scmp.eq.s32.totalorder %s27, 2
      %p66 = por %p64, %p65
      %p67 = scmp.ne.s32.totalorder %s58, %s59
      %p68 = scmp.eq.s32.totalorder %s27, 0
      %p69 = por %p67, %p68
      %p70 = scmp.ne.s32.totalorder %s58, %s59
      %p71 = scmp.eq.s32.totalorder %s28, 2
      %p72 = por %p70, %p71
      %p74 = scmp.ne.s32.totalorder %s59, %s73
      %p75 = scmp.eq.s32.totalorder %s28, 0
      %p76 = por %p74, %p75
      %s78 = sadd.s32 %s77, 1
      %p81 = scmp.eq.s32.totalorder %s22, 2
      %p82 = scmp.ne.s32.totalorder %s77, %s79
      %p83 = scmp.eq.s32.totalorder %s22, 0
      %p84 = por %p82, %p83
      %p85 = scmp.ne.s32.totalorder %s77, %s79
      %p86 = scmp.eq.s32.totalorder %s27, 2
      %p87 = por %p85, %p86
      %p88 = scmp.ne.s32.totalorder %s79, %s80
      %p89 = scmp.eq.s32.totalorder %s27, 0
      %p90 = por %p88, %p89
      %p91 = scmp.ne.s32.totalorder %s79, %s80
      %p92 = scmp.eq.s32.totalorder %s28, 2
      %p93 = por %p91, %p92
      %p95 = scmp.ne.s32.totalorder %s80, %s94
      %p96 = scmp.eq.s32.totalorder %s28, 0
      %p97 = por %p95, %p96
      %s98 = ssub.s32 %s22, %s29
      %p99 = scmp.eq.s32.totalorder %s98, 0
      %s101 = sadd.s32 %s100, 1
      %s102 = scalar_select %p99, %s100, %s101
      %p105 = pneg %p99
      %p106 = scmp.eq.s32.totalorder %s22, 2
      %p107 = por %p105, %p106
      %p108 = scmp.ne.s32.totalorder %s100, %s103
      %p109 = scmp.eq.s32.totalorder %s22, 0
      %p110 = por %p108, %p109
      %p111 = scmp.ne.s32.totalorder %s100, %s103
      %p112 = scmp.eq.s32.totalorder %s27, 2
      %p113 = por %p111, %p112
      %p114 = scmp.ne.s32.totalorder %s103, %s104
      %p115 = scmp.eq.s32.totalorder %s27, 0
      %p116 = por %p114, %p115
      %p117 = scmp.ne.s32.totalorder %s103, %s104
      %p118 = scmp.eq.s32.totalorder %s28, 2
      %p119 = por %p117, %p118
      %p121 = scmp.ne.s32.totalorder %s104, %s120
      %p122 = scmp.eq.s32.totalorder %s28, 0
      %p123 = por %p121, %p122
      %s124 = ssub.s32 %s22, %s29
      %p125 = scmp.eq.s32.totalorder %s124, 0
      %s127 = sadd.s32 %s126, 1
      %s128 = scalar_select %p125, %s126, %s127
      %p131 = pneg %p125
      %p132 = scmp.eq.s32.totalorder %s22, 2
      %p133 = por %p131, %p132
      %p134 = scmp.ne.s32.totalorder %s126, %s129
      %p135 = scmp.eq.s32.totalorder %s22, 0
      %p136 = por %p134, %p135
      %p137 = scmp.ne.s32.totalorder %s126, %s129
      %p138 = scmp.eq.s32.totalorder %s27, 2
      %p139 = por %p137, %p138
      %p140 = scmp.ne.s32.totalorder %s129, %s130
      %p141 = scmp.eq.s32.totalorder %s27, 0
      %p142 = por %p140, %p141
      %p143 = scmp.ne.s32.totalorder %s129, %s130
      %p144 = scmp.eq.s32.totalorder %s28, 2
      %p145 = por %p143, %p144
      %p147 = scmp.ne.s32.totalorder %s130, %s146
      %p148 = scmp.eq.s32.totalorder %s28, 0
      %p149 = por %p147, %p148
      %s150 = ssub.s32 %s22, %s29
      %p151 = scmp.eq.s32.totalorder %s150, 0
      %s153 = sadd.s32 %s152, 1
      %s154 = scalar_select %p151, %s152, %s153
      %p157 = pneg %p151
      %p158 = scmp.eq.s32.totalorder %s22, 2
      %p159 = por %p157, %p158
      %p160 = scmp.ne.s32.totalorder %s152, %s155
      %p161 = scmp.eq.s32.totalorder %s22, 0
      %p162 = por %p160, %p161
      %p163 = scmp.ne.s32.totalorder %s152, %s155
      %p164 = scmp.eq.s32.totalorder %s27, 2
      %p165 = por %p163, %p164
      %p166 = scmp.ne.s32.totalorder %s155, %s156
      %p167 = scmp.eq.s32.totalorder %s27, 0
      %p168 = por %p166, %p167
      %p169 = scmp.ne.s32.totalorder %s155, %s156
      %p170 = scmp.eq.s32.totalorder %s28, 2
      %p171 = por %p169, %p170
      %p173 = scmp.ne.s32.totalorder %s156, %s172
      %p174 = scmp.eq.s32.totalorder %s28, 0
      %p175 = por %p173, %p174
      %p176 = scmp.le.s32.totalorder 1, %s22
      %p177 = scmp.lt.s32.totalorder %s22, 4
      %p178 = pnand %p176, %p177
      %p179 = pneg %p178
      // Predicated region
      $region9: #{tpu_custom_call.1} parent=5 // pred_check
        _
      $region10: #{tpu_custom_call.1} parent=5 // pred_check_branch
        %181 = sbr.rel (%p178) target = $region12
      $region11: #{tpu_custom_call.1} parent=5 // pred_region
        %s182 = ssub.s32 %s22, 1
        // Predicated region
        $region13: #{tpu_custom_call.1} parent=11 // pred_check
          %p183 = pneg %p69
        $region14: #{tpu_custom_call.1} parent=11 // pred_check_branch
          %185 = sbr.rel (%p183) target = $region16
        $region15: #{tpu_custom_call.1} parent=11 // pred_region
          %187 = vsyncadd [#allocation6], 0
          %s188 = sshll.u32 %s1, 4
          %s189 = int_to_ptr.hbm [resolvable:$true] %s188
          %s190 = sshll.u32 [#allocation5], 4
          %s191 = int_to_ptr.vmem [resolvable:$true] %s190
          %196 = dma.hbm_to_vmem [thread:$0]  %s189, 4096, %s191, [#allocation6], 128, 128, 8
        $region16: #{tpu_custom_call.1} parent=11 // pred_fallthru
          _
        // Predicated region
        $region17: #{tpu_custom_call.1} parent=11 // pred_check
          %p197 = pneg %p90
        $region18: #{tpu_custom_call.1} parent=11 // pred_check_branch
          %199 = sbr.rel (%p197) target = $region20
        $region19: #{tpu_custom_call.1} parent=11 // pred_region
          _
        $region20: #{tpu_custom_call.1} parent=11 // pred_fallthru
          _
      $region12: #{tpu_custom_call.1} parent=5 // pred_fallthru
        _
      %p200 = scmp.lt.s32.totalorder %s22, 3
      // Predicated region
      $region21: #{tpu_custom_call.1} parent=5 // pred_check
        %p201 = pneg %p200
      $region22: #{tpu_custom_call.1} parent=5 // pred_check_branch
        %203 = sbr.rel (%p201) target = $region24
      $region23: #{tpu_custom_call.1} parent=5 // pred_region
        // Predicated region
        $region25: #{tpu_custom_call.1} parent=23 // pred_check
          %p204 = pneg %p42
        $region26: #{tpu_custom_call.1} parent=23 // pred_check_branch
          %206 = sbr.rel (%p204) target = $region28
        $region27: #{tpu_custom_call.1} parent=23 // pred_region
          %s207 = sand.u32 %s32, 1
          %s208 = scalar_lea.sflag [#allocation3], %s207
          %s209 = sand.u32 %s32, 1
          %s210 = smul.addr %s209, 512
          %s211 = scalar_lea.vmem [#allocation2], %s210
          %s212 = smul.u32 32, %s22
          %214 = vsyncadd %s208, 0
          %s215 = smul.addr %s212, 2
          %s216 = smul.addr %s215, 8
          %s217 = scalar_lea.hbm %s0, %s216
          %s218 = sshll.u32 %s217, 4
          %s219 = int_to_ptr.hbm [resolvable:$true] %s218
          %s220 = sshll.u32 %s211, 4
          %s221 = int_to_ptr.vmem [resolvable:$true] %s220
          %226 = dma.hbm_to_vmem [thread:$0]  %s219, 8192, %s221, %s208, 256, 256, 16
        $region28: #{tpu_custom_call.1} parent=23 // pred_fallthru
          _
      $region24: #{tpu_custom_call.1} parent=5 // pred_fallthru
        _
      %p227 = scmp.le.s32.totalorder 1, %s22
      %p228 = scmp.lt.s32.totalorder %s22, 4
      %p229 = pnand %p227, %p228
      %p230 = pneg %p229
      // Predicated region
      $region29: #{tpu_custom_call.1} parent=5 // pred_check
        _
      $region30: #{tpu_custom_call.1} parent=5 // pred_check_branch
        %232 = sbr.rel (%p229) target = $region32
      $region31: #{tpu_custom_call.1} parent=5 // pred_region
        %s233 = ssub.s32 %s22, 1
        %s234 = sand.u32 %s35, 1
        %s235 = scalar_lea.sflag [#allocation3], %s234
        %s236 = sand.u32 %s35, 1
        %s237 = smul.addr %s236, 512
        %s238 = scalar_lea.vmem [#allocation2], %s237
        // Predicated region
        $region33: #{tpu_custom_call.1} parent=31 // pred_check
          %p239 = pneg %p48
        $region34: #{tpu_custom_call.1} parent=31 // pred_check_branch
          %241 = sbr.rel (%p239) target = $region36
        $region35: #{tpu_custom_call.1} parent=31 // pred_region
          %243 = dma.done %s235, 8192
        $region36: #{tpu_custom_call.1} parent=31 // pred_fallthru
          _
        // Predicated region
        $region37: #{tpu_custom_call.1} parent=31 // pred_check
          %p244 = pneg %p69
        $region38: #{tpu_custom_call.1} parent=31 // pred_check_branch
          %246 = sbr.rel (%p244) target = $region40
        $region39: #{tpu_custom_call.1} parent=31 // pred_region
          %248 = dma.done [#allocation6], 4096
        $region40: #{tpu_custom_call.1} parent=31 // pred_fallthru
          _
        %s249 = sand.u32 %s35, 1
        %s250 = scalar_lea.sflag [#allocation3], %s249
        %s251 = sand.u32 %s35, 1
        %s252 = smul.addr %s251, 512
        %s253 = scalar_lea.vmem [#allocation2], %s252
        %p254 = pneg %p48
        %p255 = pneg %p45
        %p256 = pneg %p69
        %p257 = pneg %p66
        %p258 = pneg %p90
        %p259 = pneg %p87
        %p260 = pneg %p116
        %p261 = pneg %p113
        %s262 = sand.u32 %s103, 1
        %s263 = scalar_lea.sflag [#allocation4], %s262
        %s264 = sand.u32 %s103, 1
        %s265 = smul.addr %s264, 256
        %s266 = scalar_lea.vmem [#allocation7], %s265
        %p267 = pneg %p142
        %p268 = pneg %p139
        %s269 = sand.u32 %s27, 1
        %s270 = scalar_lea.sflag [#allocation9], %s269
        %s271 = sand.u32 %s129, 1
        %s272 = smul.addr %s271, 256
        %s273 = scalar_lea.vmem [#allocation8], %s272
        %p274 = pneg %p168
        %p275 = pneg %p165
        %s276 = sand.u32 %s27, 1
        %s277 = scalar_lea.sflag [#allocation9], %s276
        %s278 = sand.u32 %s155, 1
        %s279 = smul.addr %s278, 256
        %s280 = scalar_lea.vmem [#allocation10], %s279
        %s281 = smul.u32 32, %s27
        %s282 = smul.u32 32, %s27
        %s283 = smul.u32 32, %s27
        %s284 = smul.u32 2, %s27
        %v285 = vld [vmem:[%s238] sm:$0xff]
        %v286 = vld [vmem:[%s238 + $0x8] sm:$0xff]
        %v287 = vld [vmem:[%s238 + $0x10] sm:$0xff]
        %v288 = vld [vmem:[%s238 + $0x18] sm:$0xff]
        %v289 = vld [vmem:[%s238 + $0x20] sm:$0xff]
        %v290 = vld [vmem:[%s238 + $0x28] sm:$0xff]
        %v291 = vld [vmem:[%s238 + $0x30] sm:$0xff]
        %v292 = vld [vmem:[%s238 + $0x38] sm:$0xff]
        %v293 = vld [vmem:[%s238 + $0x40] sm:$0xff]
        %v294 = vld [vmem:[%s238 + $0x48] sm:$0xff]
        %v295 = vld [vmem:[%s238 + $0x50] sm:$0xff]
        %v296 = vld [vmem:[%s238 + $0x58] sm:$0xff]
        %v297 = vld [vmem:[%s238 + $0x60] sm:$0xff]
        %v298 = vld [vmem:[%s238 + $0x68] sm:$0xff]
        %v299 = vld [vmem:[%s238 + $0x70] sm:$0xff]
        %v300 = vld [vmem:[%s238 + $0x78] sm:$0xff]
        %v301 = vld [vmem:[%s238 + $0x80] sm:$0xff]
        %v302 = vld [vmem:[%s238 + $0x88] sm:$0xff]
        %v303 = vld [vmem:[%s238 + $0x90] sm:$0xff]
        %v304 = vld [vmem:[%s238 + $0x98] sm:$0xff]
        %v305 = vld [vmem:[%s238 + $0xa0] sm:$0xff]
        %v306 = vld [vmem:[%s238 + $0xa8] sm:$0xff]
        %v307 = vld [vmem:[%s238 + $0xb0] sm:$0xff]
        %v308 = vld [vmem:[%s238 + $0xb8] sm:$0xff]
        %v309 = vld [vmem:[%s238 + $0xc0] sm:$0xff]
        %v310 = vld [vmem:[%s238 + $0xc8] sm:$0xff]
        %v311 = vld [vmem:[%s238 + $0xd0] sm:$0xff]
        %v312 = vld [vmem:[%s238 + $0xd8] sm:$0xff]
        %v313 = vld [vmem:[%s238 + $0xe0] sm:$0xff]
        %v314 = vld [vmem:[%s238 + $0xe8] sm:$0xff]
        %v315 = vld [vmem:[%s238 + $0xf0] sm:$0xff]
        %v316 = vld [vmem:[%s238 + $0xf8] sm:$0xff]
        %v317 = vld [vmem:[%s238 + $0x100] sm:$0xff]
        %v318 = vld [vmem:[%s238 + $0x108] sm:$0xff]
        %v319 = vld [vmem:[%s238 + $0x110] sm:$0xff]
        %v320 = vld [vmem:[%s238 + $0x118] sm:$0xff]
        %v321 = vld [vmem:[%s238 + $0x120] sm:$0xff]
        %v322 = vld [vmem:[%s238 + $0x128] sm:$0xff]
        %v323 = vld [vmem:[%s238 + $0x130] sm:$0xff]
        %v324 = vld [vmem:[%s238 + $0x138] sm:$0xff]
        %v325 = vld [vmem:[%s238 + $0x140] sm:$0xff]
        %v326 = vld [vmem:[%s238 + $0x148] sm:$0xff]
        %v327 = vld [vmem:[%s238 + $0x150] sm:$0xff]
        %v328 = vld [vmem:[%s238 + $0x158] sm:$0xff]
        %v329 = vld [vmem:[%s238 + $0x160] sm:$0xff]
        %v330 = vld [vmem:[%s238 + $0x168] sm:$0xff]
        %v331 = vld [vmem:[%s238 + $0x170] sm:$0xff]
        %v332 = vld [vmem:[%s238 + $0x178] sm:$0xff]
        %v333 = vld [vmem:[%s238 + $0x180] sm:$0xff]
        %v334 = vld [vmem:[%s238 + $0x188] sm:$0xff]
        %v335 = vld [vmem:[%s238 + $0x190] sm:$0xff]
        %v336 = vld [vmem:[%s238 + $0x198] sm:$0xff]
        %v337 = vld [vmem:[%s238 + $0x1a0] sm:$0xff]
        %v338 = vld [vmem:[%s238 + $0x1a8] sm:$0xff]
        %v339 = vld [vmem:[%s238 + $0x1b0] sm:$0xff]
        %v340 = vld [vmem:[%s238 + $0x1b8] sm:$0xff]
        %v341 = vld [vmem:[%s238 + $0x1c0] sm:$0xff]
        %v342 = vld [vmem:[%s238 + $0x1c8] sm:$0xff]
        %v343 = vld [vmem:[%s238 + $0x1d0] sm:$0xff]
        %v344 = vld [vmem:[%s238 + $0x1d8] sm:$0xff]
        %v345 = vld [vmem:[%s238 + $0x1e0] sm:$0xff]
        %v346 = vld [vmem:[%s238 + $0x1e8] sm:$0xff]
        %v347 = vld [vmem:[%s238 + $0x1f0] sm:$0xff]
        %v348 = vld [vmem:[%s238 + $0x1f8] sm:$0xff]
        %v349 = vld [vmem:[#allocation5] sm:$0xff]
        %v350 = vld [vmem:[#allocation5 + $0x8] sm:$0xff]
        %v351 = vld [vmem:[#allocation5 + $0x10] sm:$0xff]
        %v352 = vld [vmem:[#allocation5 + $0x18] sm:$0xff]
        %v353 = vld [vmem:[#allocation5 + $0x20] sm:$0xff]
        %v354 = vld [vmem:[#allocation5 + $0x28] sm:$0xff]
        %v355 = vld [vmem:[#allocation5 + $0x30] sm:$0xff]
        %v356 = vld [vmem:[#allocation5 + $0x38] sm:$0xff]
        %v357 = vld [vmem:[#allocation5 + $0x40] sm:$0xff]
        %v358 = vld [vmem:[#allocation5 + $0x48] sm:$0xff]
        %v359 = vld [vmem:[#allocation5 + $0x50] sm:$0xff]
        %v360 = vld [vmem:[#allocation5 + $0x58] sm:$0xff]
        %v361 = vld [vmem:[#allocation5 + $0x60] sm:$0xff]
        %v362 = vld [vmem:[#allocation5 + $0x68] sm:$0xff]
        %v363 = vld [vmem:[#allocation5 + $0x70] sm:$0xff]
        %v364 = vld [vmem:[#allocation5 + $0x78] sm:$0xff]
        %v365 = vld [vmem:[#allocation5 + $0x80] sm:$0xff]
        %v366 = vld [vmem:[#allocation5 + $0x88] sm:$0xff]
        %v367 = vld [vmem:[#allocation5 + $0x90] sm:$0xff]
        %v368 = vld [vmem:[#allocation5 + $0x98] sm:$0xff]
        %v369 = vld [vmem:[#allocation5 + $0xa0] sm:$0xff]
        %v370 = vld [vmem:[#allocation5 + $0xa8] sm:$0xff]
        %v371 = vld [vmem:[#allocation5 + $0xb0] sm:$0xff]
        %v372 = vld [vmem:[#allocation5 + $0xb8] sm:$0xff]
        %v373 = vld [vmem:[#allocation5 + $0xc0] sm:$0xff]
        %v374 = vld [vmem:[#allocation5 + $0xc8] sm:$0xff]
        %v375 = vld [vmem:[#allocation5 + $0xd0] sm:$0xff]
        %v376 = vld [vmem:[#allocation5 + $0xd8] sm:$0xff]
        %v377 = vld [vmem:[#allocation5 + $0xe0] sm:$0xff]
        %v378 = vld [vmem:[#allocation5 + $0xe8] sm:$0xff]
        %v379 = vld [vmem:[#allocation5 + $0xf0] sm:$0xff]
        %v380 = vld [vmem:[#allocation5 + $0xf8] sm:$0xff]
        %v381 = vld [vmem:[%s2] sm:$0x1]
        %v383 = vperm.slane %v381, 0
        %385 = vmatpush.msra.mxu0 %v364
        %386 = vmatpush.msra.mxu0 %v363
        %387 = vmatpush.msra.mxu0 %v362
        %388 = vmatpush.msra.mxu0 %v361
        %389 = vmatpush.msra.mxu0 %v360
        %390 = vmatpush.msra.mxu0 %v359
        %391 = vmatpush.msra.mxu0 %v358
        %392 = vmatpush.msra.mxu0 %v357
        %393 = vmatpush.msra.mxu0 %v356
        %394 = vmatpush.msra.mxu0 %v355
        %395 = vmatpush.msra.mxu0 %v354
        %396 = vmatpush.msra.mxu0 %v353
        %397 = vmatpush.msra.mxu0 %v352
        %398 = vmatpush.msra.mxu0 %v351
        %399 = vmatpush.msra.mxu0 %v350
        %400 = vmatpush.msra.mxu0 %v349
        %401 = vmatmul.f32.gmra.mxu0 %v285
        %v402 = vpop.f32.mrf.mxu0
        %v403 = vadd.f32 %v383, %v402
        %404 = vmatmul.f32.gmra.mxu0 %v287
        %v405 = vpop.f32.mrf.mxu0
        %v406 = vadd.f32 %v383, %v405
        %407 = vmatmul.f32.gmra.mxu0 %v289
        %v408 = vpop.f32.mrf.mxu0
        %v409 = vadd.f32 %v383, %v408
        %410 = vmatmul.f32.gmra.mxu0 %v291
        %v411 = vpop.f32.mrf.mxu0
        %v412 = vadd.f32 %v383, %v411
        %413 = vmatmul.f32.gmra.mxu0 %v293
        %v414 = vpop.f32.mrf.mxu0
        %v415 = vadd.f32 %v383, %v414
        %416 = vmatmul.f32.gmra.mxu0 %v295
        %v417 = vpop.f32.mrf.mxu0
        %v418 = vadd.f32 %v383, %v417
        %419 = vmatmul.f32.gmra.mxu0 %v297
        %v420 = vpop.f32.mrf.mxu0
        %v421 = vadd.f32 %v383, %v420
        %422 = vmatmul.f32.gmra.mxu0 %v299
        %v423 = vpop.f32.mrf.mxu0
        %v424 = vadd.f32 %v383, %v423
        %425 = vmatmul.f32.gmra.mxu0 %v301
        %v426 = vpop.f32.mrf.mxu0
        %v427 = vadd.f32 %v383, %v426
        %428 = vmatmul.f32.gmra.mxu0 %v303
        %v429 = vpop.f32.mrf.mxu0
        %v430 = vadd.f32 %v383, %v429
        %431 = vmatmul.f32.gmra.mxu0 %v305
        %v432 = vpop.f32.mrf.mxu0
        %v433 = vadd.f32 %v383, %v432
        %434 = vmatmul.f32.gmra.mxu0 %v307
        %v435 = vpop.f32.mrf.mxu0
        %v436 = vadd.f32 %v383, %v435
        %437 = vmatmul.f32.gmra.mxu0 %v309
        %v438 = vpop.f32.mrf.mxu0
        %v439 = vadd.f32 %v383, %v438
        %440 = vmatmul.f32.gmra.mxu0 %v311
        %v441 = vpop.f32.mrf.mxu0
        %v442 = vadd.f32 %v383, %v441
        %443 = vmatmul.f32.gmra.mxu0 %v313
        %v444 = vpop.f32.mrf.mxu0
        %v445 = vadd.f32 %v383, %v444
        %446 = vmatmul.f32.gmra.mxu0 %v315
        %v447 = vpop.f32.mrf.mxu0
        %v448 = vadd.f32 %v383, %v447
        %449 = vmatmul.f32.gmra.mxu0 %v317
        %v450 = vpop.f32.mrf.mxu0
        %v451 = vadd.f32 %v383, %v450
        %452 = vmatmul.f32.gmra.mxu0 %v319
        %v453 = vpop.f32.mrf.mxu0
        %v454 = vadd.f32 %v383, %v453
        %455 = vmatmul.f32.gmra.mxu0 %v321
        %v456 = vpop.f32.mrf.mxu0
        %v457 = vadd.f32 %v383, %v456
        %458 = vmatmul.f32.gmra.mxu0 %v323
        %v459 = vpop.f32.mrf.mxu0
        %v460 = vadd.f32 %v383, %v459
        %461 = vmatmul.f32.gmra.mxu0 %v325
        %v462 = vpop.f32.mrf.mxu0
        %v463 = vadd.f32 %v383, %v462
        %464 = vmatmul.f32.gmra.mxu0 %v327
        %v465 = vpop.f32.mrf.mxu0
        %v466 = vadd.f32 %v383, %v465
        %467 = vmatmul.f32.gmra.mxu0 %v329
        %v468 = vpop.f32.mrf.mxu0
        %v469 = vadd.f32 %v383, %v468
        %470 = vmatmul.f32.gmra.mxu0 %v331
        %v471 = vpop.f32.mrf.mxu0
        %v472 = vadd.f32 %v383, %v471
        %473 = vmatmul.f32.gmra.mxu0 %v333
        %v474 = vpop.f32.mrf.mxu0
        %v475 = vadd.f32 %v383, %v474
        %476 = vmatmul.f32.gmra.mxu0 %v335
        %v477 = vpop.f32.mrf.mxu0
        %v478 = vadd.f32 %v383, %v477
        %479 = vmatmul.f32.gmra.mxu0 %v337
        %v480 = vpop.f32.mrf.mxu0
        %v481 = vadd.f32 %v383, %v480
        %482 = vmatmul.f32.gmra.mxu0 %v339
        %v483 = vpop.f32.mrf.mxu0
        %v484 = vadd.f32 %v383, %v483
        %485 = vmatmul.f32.gmra.mxu0 %v341
        %v486 = vpop.f32.mrf.mxu0
        %v487 = vadd.f32 %v383, %v486
        %488 = vmatmul.f32.gmra.mxu0 %v343
        %v489 = vpop.f32.mrf.mxu0
        %v490 = vadd.f32 %v383, %v489
        %491 = vmatmul.f32.gmra.mxu0 %v345
        %v492 = vpop.f32.mrf.mxu0
        %v493 = vadd.f32 %v383, %v492
        %494 = vmatmul.f32.gmra.mxu0 %v347
        %v495 = vpop.f32.mrf.mxu0
        %v496 = vadd.f32 %v383, %v495
        %497 = vdwg.mxu0
        %498 = vmatpush.msra.mxu0 %v380
        %499 = vmatpush.msra.mxu0 %v379
        %500 = vmatpush.msra.mxu0 %v378
        %501 = vmatpush.msra.mxu0 %v377
        %502 = vmatpush.msra.mxu0 %v376
        %503 = vmatpush.msra.mxu0 %v375
        %504 = vmatpush.msra.mxu0 %v374
        %505 = vmatpush.msra.mxu0 %v373
        %506 = vmatpush.msra.mxu0 %v372
        %507 = vmatpush.msra.mxu0 %v371
        %508 = vmatpush.msra.mxu0 %v370
        %509 = vmatpush.msra.mxu0 %v369
        %510 = vmatpush.msra.mxu0 %v368
        %511 = vmatpush.msra.mxu0 %v367
        %512 = vmatpush.msra.mxu0 %v366
        %513 = vmatpush.msra.mxu0 %v365
        %514 = vmatmul.f32.gmra.mxu0 %v286
        %v515 = vpop.f32.mrf.mxu0
        %v516 = vadd.f32 %v403, %v515
        %517 = vmatmul.f32.gmra.mxu0 %v288
        %v518 = vpop.f32.mrf.mxu0
        %v519 = vadd.f32 %v406, %v518
        %520 = vmatmul.f32.gmra.mxu0 %v290
        %v521 = vpop.f32.mrf.mxu0
        %v522 = vadd.f32 %v409, %v521
        %523 = vmatmul.f32.gmra.mxu0 %v292
        %v524 = vpop.f32.mrf.mxu0
        %v525 = vadd.f32 %v412, %v524
        %526 = vmatmul.f32.gmra.mxu0 %v294
        %v527 = vpop.f32.mrf.mxu0
        %v528 = vadd.f32 %v415, %v527
        %529 = vmatmul.f32.gmra.mxu0 %v296
        %v530 = vpop.f32.mrf.mxu0
        %v531 = vadd.f32 %v418, %v530
        %532 = vmatmul.f32.gmra.mxu0 %v298
        %v533 = vpop.f32.mrf.mxu0
        %v534 = vadd.f32 %v421, %v533
        %535 = vmatmul.f32.gmra.mxu0 %v300
        %v536 = vpop.f32.mrf.mxu0
        %v537 = vadd.f32 %v424, %v536
        %538 = vmatmul.f32.gmra.mxu0 %v302
        %v539 = vpop.f32.mrf.mxu0
        %v540 = vadd.f32 %v427, %v539
        %541 = vmatmul.f32.gmra.mxu0 %v304
        %v542 = vpop.f32.mrf.mxu0
        %v543 = vadd.f32 %v430, %v542
        %544 = vmatmul.f32.gmra.mxu0 %v306
        %v545 = vpop.f32.mrf.mxu0
        %v546 = vadd.f32 %v433, %v545
        %547 = vmatmul.f32.gmra.mxu0 %v308
        %v548 = vpop.f32.mrf.mxu0
        %v549 = vadd.f32 %v436, %v548
        %550 = vmatmul.f32.gmra.mxu0 %v310
        %v551 = vpop.f32.mrf.mxu0
        %v552 = vadd.f32 %v439, %v551
        %553 = vmatmul.f32.gmra.mxu0 %v312
        %v554 = vpop.f32.mrf.mxu0
        %v555 = vadd.f32 %v442, %v554
        %556 = vmatmul.f32.gmra.mxu0 %v314
        %v557 = vpop.f32.mrf.mxu0
        %v558 = vadd.f32 %v445, %v557
        %559 = vmatmul.f32.gmra.mxu0 %v316
        %v560 = vpop.f32.mrf.mxu0
        %v561 = vadd.f32 %v448, %v560
        %562 = vmatmul.f32.gmra.mxu0 %v318
        %v563 = vpop.f32.mrf.mxu0
        %v564 = vadd.f32 %v451, %v563
        %565 = vmatmul.f32.gmra.mxu0 %v320
        %v566 = vpop.f32.mrf.mxu0
        %v567 = vadd.f32 %v454, %v566
        %568 = vmatmul.f32.gmra.mxu0 %v322
        %v569 = vpop.f32.mrf.mxu0
        %v570 = vadd.f32 %v457, %v569
        %571 = vmatmul.f32.gmra.mxu0 %v324
        %v572 = vpop.f32.mrf.mxu0
        %v573 = vadd.f32 %v460, %v572
        %574 = vmatmul.f32.gmra.mxu0 %v326
        %v575 = vpop.f32.mrf.mxu0
        %v576 = vadd.f32 %v463, %v575
        %577 = vmatmul.f32.gmra.mxu0 %v328
        %v578 = vpop.f32.mrf.mxu0
        %v579 = vadd.f32 %v466, %v578
        %580 = vmatmul.f32.gmra.mxu0 %v330
        %v581 = vpop.f32.mrf.mxu0
        %v582 = vadd.f32 %v469, %v581
        %583 = vmatmul.f32.gmra.mxu0 %v332
        %v584 = vpop.f32.mrf.mxu0
        %v585 = vadd.f32 %v472, %v584
        %586 = vmatmul.f32.gmra.mxu0 %v334
        %v587 = vpop.f32.mrf.mxu0
        %v588 = vadd.f32 %v475, %v587
        %589 = vmatmul.f32.gmra.mxu0 %v336
        %v590 = vpop.f32.mrf.mxu0
        %v591 = vadd.f32 %v478, %v590
        %592 = vmatmul.f32.gmra.mxu0 %v338
        %v593 = vpop.f32.mrf.mxu0
        %v594 = vadd.f32 %v481, %v593
        %595 = vmatmul.f32.gmra.mxu0 %v340
        %v596 = vpop.f32.mrf.mxu0
        %v597 = vadd.f32 %v484, %v596
        %598 = vmatmul.f32.gmra.mxu0 %v342
        %v599 = vpop.f32.mrf.mxu0
        %v600 = vadd.f32 %v487, %v599
        %601 = vmatmul.f32.gmra.mxu0 %v344
        %v602 = vpop.f32.mrf.mxu0
        %v603 = vadd.f32 %v490, %v602
        %604 = vmatmul.f32.gmra.mxu0 %v346
        %v605 = vpop.f32.mrf.mxu0
        %v606 = vadd.f32 %v493, %v605
        %607 = vmatmul.f32.gmra.mxu0 %v348
        %v608 = vpop.f32.mrf.mxu0
        %v609 = vadd.f32 %v496, %v608
        %610 = vdwg.mxu0
        %v611 = vmax.f32 %v516, 0.0
        %v612 = vmax.f32 %v519, 0.0
        %v613 = vmax.f32 %v522, 0.0
        %v614 = vmax.f32 %v525, 0.0
        %v615 = vmax.f32 %v528, 0.0
        %v616 = vmax.f32 %v531, 0.0
        %v617 = vmax.f32 %v534, 0.0
        %v618 = vmax.f32 %v537, 0.0
        %v619 = vmax.f32 %v540, 0.0
        %v620 = vmax.f32 %v543, 0.0
        %v621 = vmax.f32 %v546, 0.0
        %v622 = vmax.f32 %v549, 0.0
        %v623 = vmax.f32 %v552, 0.0
        %v624 = vmax.f32 %v555, 0.0
        %v625 = vmax.f32 %v558, 0.0
        %v626 = vmax.f32 %v561, 0.0
        %v627 = vmax.f32 %v564, 0.0
        %v628 = vmax.f32 %v567, 0.0
        %v629 = vmax.f32 %v570, 0.0
        %v630 = vmax.f32 %v573, 0.0
        %v631 = vmax.f32 %v576, 0.0
        %v632 = vmax.f32 %v579, 0.0
        %v633 = vmax.f32 %v582, 0.0
        %v634 = vmax.f32 %v585, 0.0
        %v635 = vmax.f32 %v588, 0.0
        %v636 = vmax.f32 %v591, 0.0
        %v637 = vmax.f32 %v594, 0.0
        %v638 = vmax.f32 %v597, 0.0
        %v639 = vmax.f32 %v600, 0.0
        %v640 = vmax.f32 %v603, 0.0
        %v641 = vmax.f32 %v606, 0.0
        %v642 = vmax.f32 %v609, 0.0
        %643 = vst [vmem:[%s266] sm:$0xff] %v611
        %644 = vst [vmem:[%s266 + $0x8] sm:$0xff] %v612
        %645 = vst [vmem:[%s266 + $0x10] sm:$0xff] %v613
        %646 = vst [vmem:[%s266 + $0x18] sm:$0xff] %v614
        %647 = vst [vmem:[%s266 + $0x20] sm:$0xff] %v615
        %648 = vst [vmem:[%s266 + $0x28] sm:$0xff] %v616
        %649 = vst [vmem:[%s266 + $0x30] sm:$0xff] %v617
        %650 = vst [vmem:[%s266 + $0x38] sm:$0xff] %v618
        %651 = vst [vmem:[%s266 + $0x40] sm:$0xff] %v619
        %652 = vst [vmem:[%s266 + $0x48] sm:$0xff] %v620
        %653 = vst [vmem:[%s266 + $0x50] sm:$0xff] %v621
        %654 = vst [vmem:[%s266 + $0x58] sm:$0xff] %v622
        %655 = vst [vmem:[%s266 + $0x60] sm:$0xff] %v623
        %656 = vst [vmem:[%s266 + $0x68] sm:$0xff] %v624
        %657 = vst [vmem:[%s266 + $0x70] sm:$0xff] %v625
        %658 = vst [vmem:[%s266 + $0x78] sm:$0xff] %v626
        %659 = vst [vmem:[%s266 + $0x80] sm:$0xff] %v627
        %660 = vst [vmem:[%s266 + $0x88] sm:$0xff] %v628
        %661 = vst [vmem:[%s266 + $0x90] sm:$0xff] %v629
        %662 = vst [vmem:[%s266 + $0x98] sm:$0xff] %v630
        %663 = vst [vmem:[%s266 + $0xa0] sm:$0xff] %v631
        %664 = vst [vmem:[%s266 + $0xa8] sm:$0xff] %v632
        %665 = vst [vmem:[%s266 + $0xb0] sm:$0xff] %v633
        %666 = vst [vmem:[%s266 + $0xb8] sm:$0xff] %v634
        %667 = vst [vmem:[%s266 + $0xc0] sm:$0xff] %v635
        %668 = vst [vmem:[%s266 + $0xc8] sm:$0xff] %v636
        %669 = vst [vmem:[%s266 + $0xd0] sm:$0xff] %v637
        %670 = vst [vmem:[%s266 + $0xd8] sm:$0xff] %v638
        %671 = vst [vmem:[%s266 + $0xe0] sm:$0xff] %v639
        %672 = vst [vmem:[%s266 + $0xe8] sm:$0xff] %v640
        %673 = vst [vmem:[%s266 + $0xf0] sm:$0xff] %v641
        %674 = vst [vmem:[%s266 + $0xf8] sm:$0xff] %v642
        %v675 = vmul.f32 %v611, %v611
        %v676 = vmul.f32 %v612, %v612
        %v677 = vmul.f32 %v613, %v613
        %v678 = vmul.f32 %v614, %v614
        %v679 = vmul.f32 %v615, %v615
        %v680 = vmul.f32 %v616, %v616
        %v681 = vmul.f32 %v617, %v617
        %v682 = vmul.f32 %v618, %v618
        %v683 = vmul.f32 %v619, %v619
        %v684 = vmul.f32 %v620, %v620
        %v685 = vmul.f32 %v621, %v621
        %v686 = vmul.f32 %v622, %v622
        %v687 = vmul.f32 %v623, %v623
        %v688 = vmul.f32 %v624, %v624
        %v689 = vmul.f32 %v625, %v625
        %v690 = vmul.f32 %v626, %v626
        %v691 = vmul.f32 %v627, %v627
        %v692 = vmul.f32 %v628, %v628
        %v693 = vmul.f32 %v629, %v629
        %v694 = vmul.f32 %v630, %v630
        %v695 = vmul.f32 %v631, %v631
        %v696 = vmul.f32 %v632, %v632
        %v697 = vmul.f32 %v633, %v633
        %v698 = vmul.f32 %v634, %v634
        %v699 = vmul.f32 %v635, %v635
        %v700 = vmul.f32 %v636, %v636
        %v701 = vmul.f32 %v637, %v637
        %v702 = vmul.f32 %v638, %v638
        %v703 = vmul.f32 %v639, %v639
        %v704 = vmul.f32 %v640, %v640
        %v705 = vmul.f32 %v641, %v641
        %v706 = vmul.f32 %v642, %v642
        %707 = vadd.xlane.f32.xlu0 %v675
        %v708 = vpop.xlane.xlu0 %707
        %709 = vadd.xlane.f32.xlu0 %v676
        %v710 = vpop.xlane.xlu0 %709
        %711 = vadd.xlane.f32.xlu0 %v677
        %v712 = vpop.xlane.xlu0 %711
        %713 = vadd.xlane.f32.xlu0 %v678
        %v714 = vpop.xlane.xlu0 %713
        %715 = vadd.xlane.f32.xlu0 %v679
        %v716 = vpop.xlane.xlu0 %715
        %717 = vadd.xlane.f32.xlu0 %v680
        %v718 = vpop.xlane.xlu0 %717
        %719 = vadd.xlane.f32.xlu0 %v681
        %v720 = vpop.xlane.xlu0 %719
        %721 = vadd.xlane.f32.xlu0 %v682
        %v722 = vpop.xlane.xlu0 %721
        %723 = vadd.xlane.f32.xlu0 %v683
        %v724 = vpop.xlane.xlu0 %723
        %725 = vadd.xlane.f32.xlu0 %v684
        %v726 = vpop.xlane.xlu0 %725
        %727 = vadd.xlane.f32.xlu0 %v685
        %v728 = vpop.xlane.xlu0 %727
        %729 = vadd.xlane.f32.xlu0 %v686
        %v730 = vpop.xlane.xlu0 %729
        %731 = vadd.xlane.f32.xlu0 %v687
        %v732 = vpop.xlane.xlu0 %731
        %733 = vadd.xlane.f32.xlu0 %v688
        %v734 = vpop.xlane.xlu0 %733
        %735 = vadd.xlane.f32.xlu0 %v689
        %v736 = vpop.xlane.xlu0 %735
        %737 = vadd.xlane.f32.xlu0 %v690
        %v738 = vpop.xlane.xlu0 %737
        %739 = vadd.xlane.f32.xlu0 %v691
        %v740 = vpop.xlane.xlu0 %739
        %741 = vadd.xlane.f32.xlu0 %v692
        %v742 = vpop.xlane.xlu0 %741
        %743 = vadd.xlane.f32.xlu0 %v693
        %v744 = vpop.xlane.xlu0 %743
        %745 = vadd.xlane.f32.xlu0 %v694
        %v746 = vpop.xlane.xlu0 %745
        %747 = vadd.xlane.f32.xlu0 %v695
        %v748 = vpop.xlane.xlu0 %747
        %749 = vadd.xlane.f32.xlu0 %v696
        %v750 = vpop.xlane.xlu0 %749
        %751 = vadd.xlane.f32.xlu0 %v697
        %v752 = vpop.xlane.xlu0 %751
        %753 = vadd.xlane.f32.xlu0 %v698
        %v754 = vpop.xlane.xlu0 %753
        %755 = vadd.xlane.f32.xlu0 %v699
        %v756 = vpop.xlane.xlu0 %755
        %757 = vadd.xlane.f32.xlu0 %v700
        %v758 = vpop.xlane.xlu0 %757
        %759 = vadd.xlane.f32.xlu0 %v701
        %v760 = vpop.xlane.xlu0 %759
        %761 = vadd.xlane.f32.xlu0 %v702
        %v762 = vpop.xlane.xlu0 %761
        %763 = vadd.xlane.f32.xlu0 %v703
        %v764 = vpop.xlane.xlu0 %763
        %765 = vadd.xlane.f32.xlu0 %v704
        %v766 = vpop.xlane.xlu0 %765
        %767 = vadd.xlane.f32.xlu0 %v705
        %v768 = vpop.xlane.xlu0 %767
        %769 = vadd.xlane.f32.xlu0 %v706
        %v770 = vpop.xlane.xlu0 %769
        %v771 = vmax.f32 %v708, 1e-24
        %v772 = vmax.f32 %v710, 1e-24
        %v773 = vmax.f32 %v712, 1e-24
        %v774 = vmax.f32 %v714, 1e-24
        %v775 = vmax.f32 %v716, 1e-24
        %v776 = vmax.f32 %v718, 1e-24
        %v777 = vmax.f32 %v720, 1e-24
        %v778 = vmax.f32 %v722, 1e-24
        %v779 = vmax.f32 %v724, 1e-24
        %v780 = vmax.f32 %v726, 1e-24
        %v781 = vmax.f32 %v728, 1e-24
        %v782 = vmax.f32 %v730, 1e-24
        %v783 = vmax.f32 %v732, 1e-24
        %v784 = vmax.f32 %v734, 1e-24
        %v785 = vmax.f32 %v736, 1e-24
        %v786 = vmax.f32 %v738, 1e-24
        %v787 = vmax.f32 %v740, 1e-24
        %v788 = vmax.f32 %v742, 1e-24
        %v789 = vmax.f32 %v744, 1e-24
        %v790 = vmax.f32 %v746, 1e-24
        %v791 = vmax.f32 %v748, 1e-24
        %v792 = vmax.f32 %v750, 1e-24
        %v793 = vmax.f32 %v752, 1e-24
        %v794 = vmax.f32 %v754, 1e-24
        %v795 = vmax.f32 %v756, 1e-24
        %v796 = vmax.f32 %v758, 1e-24
        %v797 = vmax.f32 %v760, 1e-24
        %v798 = vmax.f32 %v762, 1e-24
        %v799 = vmax.f32 %v764, 1e-24
        %v800 = vmax.f32 %v766, 1e-24
        %v801 = vmax.f32 %v768, 1e-24
        %v802 = vmax.f32 %v770, 1e-24
        %v803 = vrsqrt.pop %v771
        %v804 = vmul.f32 %v803, %v771
        %v805 = vmul.f32 %v804, %v803
        %v806 = vmul.f32 0.5, %v805
        %v807 = vsub.f32 1.5, %v806
        %v808 = vmul.f32 %v803, %v807
        %vm809 = vweird.f32 %v771
        %vm810 = vweird.f32 %v803
        %vm811 = vmor %vm809, %vm810
        %v812 = vsel %vm811, %v803, %v808
        %v813 = vrsqrt.pop %v772
        %v814 = vmul.f32 %v813, %v772
        %v815 = vmul.f32 %v814, %v813
        %v816 = vmul.f32 0.5, %v815
        %v817 = vsub.f32 1.5, %v816
        %v818 = vmul.f32 %v813, %v817
        %vm819 = vweird.f32 %v772
        %vm820 = vweird.f32 %v813
        %vm821 = vmor %vm819, %vm820
        %v822 = vsel %vm821, %v813, %v818
        %v823 = vrsqrt.pop %v773
        %v824 = vmul.f32 %v823, %v773
        %v825 = vmul.f32 %v824, %v823
        %v826 = vmul.f32 0.5, %v825
        %v827 = vsub.f32 1.5, %v826
        %v828 = vmul.f32 %v823, %v827
        %vm829 = vweird.f32 %v773
        %vm830 = vweird.f32 %v823
        %vm831 = vmor %vm829, %vm830
        %v832 = vsel %vm831, %v823, %v828
        %v833 = vrsqrt.pop %v774
        %v834 = vmul.f32 %v833, %v774
        %v835 = vmul.f32 %v834, %v833
        %v836 = vmul.f32 0.5, %v835
        %v837 = vsub.f32 1.5, %v836
        %v838 = vmul.f32 %v833, %v837
        %vm839 = vweird.f32 %v774
        %vm840 = vweird.f32 %v833
        %vm841 = vmor %vm839, %vm840
        %v842 = vsel %vm841, %v833, %v838
        %v843 = vrsqrt.pop %v775
        %v844 = vmul.f32 %v843, %v775
        %v845 = vmul.f32 %v844, %v843
        %v846 = vmul.f32 0.5, %v845
        %v847 = vsub.f32 1.5, %v846
        %v848 = vmul.f32 %v843, %v847
        %vm849 = vweird.f32 %v775
        %vm850 = vweird.f32 %v843
        %vm851 = vmor %vm849, %vm850
        %v852 = vsel %vm851, %v843, %v848
        %v853 = vrsqrt.pop %v776
        %v854 = vmul.f32 %v853, %v776
        %v855 = vmul.f32 %v854, %v853
        %v856 = vmul.f32 0.5, %v855
        %v857 = vsub.f32 1.5, %v856
        %v858 = vmul.f32 %v853, %v857
        %vm859 = vweird.f32 %v776
        %vm860 = vweird.f32 %v853
        %vm861 = vmor %vm859, %vm860
        %v862 = vsel %vm861, %v853, %v858
        %v863 = vrsqrt.pop %v777
        %v864 = vmul.f32 %v863, %v777
        %v865 = vmul.f32 %v864, %v863
        %v866 = vmul.f32 0.5, %v865
        %v867 = vsub.f32 1.5, %v866
        %v868 = vmul.f32 %v863, %v867
        %vm869 = vweird.f32 %v777
        %vm870 = vweird.f32 %v863
        %vm871 = vmor %vm869, %vm870
        %v872 = vsel %vm871, %v863, %v868
        %v873 = vrsqrt.pop %v778
        %v874 = vmul.f32 %v873, %v778
        %v875 = vmul.f32 %v874, %v873
        %v876 = vmul.f32 0.5, %v875
        %v877 = vsub.f32 1.5, %v876
        %v878 = vmul.f32 %v873, %v877
        %vm879 = vweird.f32 %v778
        %vm880 = vweird.f32 %v873
        %vm881 = vmor %vm879, %vm880
        %v882 = vsel %vm881, %v873, %v878
        %v883 = vrsqrt.pop %v779
        %v884 = vmul.f32 %v883, %v779
        %v885 = vmul.f32 %v884, %v883
        %v886 = vmul.f32 0.5, %v885
        %v887 = vsub.f32 1.5, %v886
        %v888 = vmul.f32 %v883, %v887
        %vm889 = vweird.f32 %v779
        %vm890 = vweird.f32 %v883
        %vm891 = vmor %vm889, %vm890
        %v892 = vsel %vm891, %v883, %v888
        %v893 = vrsqrt.pop %v780
        %v894 = vmul.f32 %v893, %v780
        %v895 = vmul.f32 %v894, %v893
        %v896 = vmul.f32 0.5, %v895
        %v897 = vsub.f32 1.5, %v896
        %v898 = vmul.f32 %v893, %v897
        %vm899 = vweird.f32 %v780
        %vm900 = vweird.f32 %v893
        %vm901 = vmor %vm899, %vm900
        %v902 = vsel %vm901, %v893, %v898
        %v903 = vrsqrt.pop %v781
        %v904 = vmul.f32 %v903, %v781
        %v905 = vmul.f32 %v904, %v903
        %v906 = vmul.f32 0.5, %v905
        %v907 = vsub.f32 1.5, %v906
        %v908 = vmul.f32 %v903, %v907
        %vm909 = vweird.f32 %v781
        %vm910 = vweird.f32 %v903
        %vm911 = vmor %vm909, %vm910
        %v912 = vsel %vm911, %v903, %v908
        %v913 = vrsqrt.pop %v782
        %v914 = vmul.f32 %v913, %v782
        %v915 = vmul.f32 %v914, %v913
        %v916 = vmul.f32 0.5, %v915
        %v917 = vsub.f32 1.5, %v916
        %v918 = vmul.f32 %v913, %v917
        %vm919 = vweird.f32 %v782
        %vm920 = vweird.f32 %v913
        %vm921 = vmor %vm919, %vm920
        %v922 = vsel %vm921, %v913, %v918
        %v923 = vrsqrt.pop %v783
        %v924 = vmul.f32 %v923, %v783
        %v925 = vmul.f32 %v924, %v923
        %v926 = vmul.f32 0.5, %v925
        %v927 = vsub.f32 1.5, %v926
        %v928 = vmul.f32 %v923, %v927
        %vm929 = vweird.f32 %v783
        %vm930 = vweird.f32 %v923
        %vm931 = vmor %vm929, %vm930
        %v932 = vsel %vm931, %v923, %v928
        %v933 = vrsqrt.pop %v784
        %v934 = vmul.f32 %v933, %v784
        %v935 = vmul.f32 %v934, %v933
        %v936 = vmul.f32 0.5, %v935
        %v937 = vsub.f32 1.5, %v936
        %v938 = vmul.f32 %v933, %v937
        %vm939 = vweird.f32 %v784
        %vm940 = vweird.f32 %v933
        %vm941 = vmor %vm939, %vm940
        %v942 = vsel %vm941, %v933, %v938
        %v943 = vrsqrt.pop %v785
        %v944 = vmul.f32 %v943, %v785
        %v945 = vmul.f32 %v944, %v943
        %v946 = vmul.f32 0.5, %v945
        %v947 = vsub.f32 1.5, %v946
        %v948 = vmul.f32 %v943, %v947
        %vm949 = vweird.f32 %v785
        %vm950 = vweird.f32 %v943
        %vm951 = vmor %vm949, %vm950
        %v952 = vsel %vm951, %v943, %v948
        %v953 = vrsqrt.pop %v786
        %v954 = vmul.f32 %v953, %v786
        %v955 = vmul.f32 %v954, %v953
        %v956 = vmul.f32 0.5, %v955
        %v957 = vsub.f32 1.5, %v956
        %v958 = vmul.f32 %v953, %v957
        %vm959 = vweird.f32 %v786
        %vm960 = vweird.f32 %v953
        %vm961 = vmor %vm959, %vm960
        %v962 = vsel %vm961, %v953, %v958
        %v963 = vrsqrt.pop %v787
        %v964 = vmul.f32 %v963, %v787
        %v965 = vmul.f32 %v964, %v963
        %v966 = vmul.f32 0.5, %v965
        %v967 = vsub.f32 1.5, %v966
        %v968 = vmul.f32 %v963, %v967
        %vm969 = vweird.f32 %v787
        %vm970 = vweird.f32 %v963
        %vm971 = vmor %vm969, %vm970
        %v972 = vsel %vm971, %v963, %v968
        %v973 = vrsqrt.pop %v788
        %v974 = vmul.f32 %v973, %v788
        %v975 = vmul.f32 %v974, %v973
        %v976 = vmul.f32 0.5, %v975
        %v977 = vsub.f32 1.5, %v976
        %v978 = vmul.f32 %v973, %v977
        %vm979 = vweird.f32 %v788
        %vm980 = vweird.f32 %v973
        %vm981 = vmor %vm979, %vm980
        %v982 = vsel %vm981, %v973, %v978
        %v983 = vrsqrt.pop %v789
        %v984 = vmul.f32 %v983, %v789
        %v985 = vmul.f32 %v984, %v983
        %v986 = vmul.f32 0.5, %v985
        %v987 = vsub.f32 1.5, %v986
        %v988 = vmul.f32 %v983, %v987
        %vm989 = vweird.f32 %v789
        %vm990 = vweird.f32 %v983
        %vm991 = vmor %vm989, %vm990
        %v992 = vsel %vm991, %v983, %v988
        %v993 = vrsqrt.pop %v790
        %v994 = vmul.f32 %v993, %v790
        %v995 = vmul.f32 %v994, %v993
        %v996 = vmul.f32 0.5, %v995
        %v997 = vsub.f32 1.5, %v996
        %v998 = vmul.f32 %v993, %v997
        %vm999 = vweird.f32 %v790
        %vm1000 = vweird.f32 %v993
        %vm1001 = vmor %vm999, %vm1000
        %v1002 = vsel %vm1001, %v993, %v998
        %v1003 = vrsqrt.pop %v791
        %v1004 = vmul.f32 %v1003, %v791
        %v1005 = vmul.f32 %v1004, %v1003
        %v1006 = vmul.f32 0.5, %v1005
        %v1007 = vsub.f32 1.5, %v1006
        %v1008 = vmul.f32 %v1003, %v1007
        %vm1009 = vweird.f32 %v791
        %vm1010 = vweird.f32 %v1003
        %vm1011 = vmor %vm1009, %vm1010
        %v1012 = vsel %vm1011, %v1003, %v1008
        %v1013 = vrsqrt.pop %v792
        %v1014 = vmul.f32 %v1013, %v792
        %v1015 = vmul.f32 %v1014, %v1013
        %v1016 = vmul.f32 0.5, %v1015
        %v1017 = vsub.f32 1.5, %v1016
        %v1018 = vmul.f32 %v1013, %v1017
        %vm1019 = vweird.f32 %v792
        %vm1020 = vweird.f32 %v1013
        %vm1021 = vmor %vm1019, %vm1020
        %v1022 = vsel %vm1021, %v1013, %v1018
        %v1023 = vrsqrt.pop %v793
        %v1024 = vmul.f32 %v1023, %v793
        %v1025 = vmul.f32 %v1024, %v1023
        %v1026 = vmul.f32 0.5, %v1025
        %v1027 = vsub.f32 1.5, %v1026
        %v1028 = vmul.f32 %v1023, %v1027
        %vm1029 = vweird.f32 %v793
        %vm1030 = vweird.f32 %v1023
        %vm1031 = vmor %vm1029, %vm1030
        %v1032 = vsel %vm1031, %v1023, %v1028
        %v1033 = vrsqrt.pop %v794
        %v1034 = vmul.f32 %v1033, %v794
        %v1035 = vmul.f32 %v1034, %v1033
        %v1036 = vmul.f32 0.5, %v1035
        %v1037 = vsub.f32 1.5, %v1036
        %v1038 = vmul.f32 %v1033, %v1037
        %vm1039 = vweird.f32 %v794
        %vm1040 = vweird.f32 %v1033
        %vm1041 = vmor %vm1039, %vm1040
        %v1042 = vsel %vm1041, %v1033, %v1038
        %v1043 = vrsqrt.pop %v795
        %v1044 = vmul.f32 %v1043, %v795
        %v1045 = vmul.f32 %v1044, %v1043
        %v1046 = vmul.f32 0.5, %v1045
        %v1047 = vsub.f32 1.5, %v1046
        %v1048 = vmul.f32 %v1043, %v1047
        %vm1049 = vweird.f32 %v795
        %vm1050 = vweird.f32 %v1043
        %vm1051 = vmor %vm1049, %vm1050
        %v1052 = vsel %vm1051, %v1043, %v1048
        %v1053 = vrsqrt.pop %v796
        %v1054 = vmul.f32 %v1053, %v796
        %v1055 = vmul.f32 %v1054, %v1053
        %v1056 = vmul.f32 0.5, %v1055
        %v1057 = vsub.f32 1.5, %v1056
        %v1058 = vmul.f32 %v1053, %v1057
        %vm1059 = vweird.f32 %v796
        %vm1060 = vweird.f32 %v1053
        %vm1061 = vmor %vm1059, %vm1060
        %v1062 = vsel %vm1061, %v1053, %v1058
        %v1063 = vrsqrt.pop %v797
        %v1064 = vmul.f32 %v1063, %v797
        %v1065 = vmul.f32 %v1064, %v1063
        %v1066 = vmul.f32 0.5, %v1065
        %v1067 = vsub.f32 1.5, %v1066
        %v1068 = vmul.f32 %v1063, %v1067
        %vm1069 = vweird.f32 %v797
        %vm1070 = vweird.f32 %v1063
        %vm1071 = vmor %vm1069, %vm1070
        %v1072 = vsel %vm1071, %v1063, %v1068
        %v1073 = vrsqrt.pop %v798
        %v1074 = vmul.f32 %v1073, %v798
        %v1075 = vmul.f32 %v1074, %v1073
        %v1076 = vmul.f32 0.5, %v1075
        %v1077 = vsub.f32 1.5, %v1076
        %v1078 = vmul.f32 %v1073, %v1077
        %vm1079 = vweird.f32 %v798
        %vm1080 = vweird.f32 %v1073
        %vm1081 = vmor %vm1079, %vm1080
        %v1082 = vsel %vm1081, %v1073, %v1078
        %v1083 = vrsqrt.pop %v799
        %v1084 = vmul.f32 %v1083, %v799
        %v1085 = vmul.f32 %v1084, %v1083
        %v1086 = vmul.f32 0.5, %v1085
        %v1087 = vsub.f32 1.5, %v1086
        %v1088 = vmul.f32 %v1083, %v1087
        %vm1089 = vweird.f32 %v799
        %vm1090 = vweird.f32 %v1083
        %vm1091 = vmor %vm1089, %vm1090
        %v1092 = vsel %vm1091, %v1083, %v1088
        %v1093 = vrsqrt.pop %v800
        %v1094 = vmul.f32 %v1093, %v800
        %v1095 = vmul.f32 %v1094, %v1093
        %v1096 = vmul.f32 0.5, %v1095
        %v1097 = vsub.f32 1.5, %v1096
        %v1098 = vmul.f32 %v1093, %v1097
        %vm1099 = vweird.f32 %v800
        %vm1100 = vweird.f32 %v1093
        %vm1101 = vmor %vm1099, %vm1100
        %v1102 = vsel %vm1101, %v1093, %v1098
        %v1103 = vrsqrt.pop %v801
        %v1104 = vmul.f32 %v1103, %v801
        %v1105 = vmul.f32 %v1104, %v1103
        %v1106 = vmul.f32 0.5, %v1105
        %v1107 = vsub.f32 1.5, %v1106
        %v1108 = vmul.f32 %v1103, %v1107
        %vm1109 = vweird.f32 %v801
        %vm1110 = vweird.f32 %v1103
        %vm1111 = vmor %vm1109, %vm1110
        %v1112 = vsel %vm1111, %v1103, %v1108
        %v1113 = vrsqrt.pop %v802
        %v1114 = vmul.f32 %v1113, %v802
        %v1115 = vmul.f32 %v1114, %v1113
        %v1116 = vmul.f32 0.5, %v1115
        %v1117 = vsub.f32 1.5, %v1116
        %v1118 = vmul.f32 %v1113, %v1117
        %vm1119 = vweird.f32 %v802
        %vm1120 = vweird.f32 %v1113
        %vm1121 = vmor %vm1119, %vm1120
        %v1122 = vsel %vm1121, %v1113, %v1118
        %v1123 = vmul.f32 %v611, %v812
        %v1124 = vmul.f32 %v612, %v822
        %v1125 = vmul.f32 %v613, %v832
        %v1126 = vmul.f32 %v614, %v842
        %v1127 = vmul.f32 %v615, %v852
        %v1128 = vmul.f32 %v616, %v862
        %v1129 = vmul.f32 %v617, %v872
        %v1130 = vmul.f32 %v618, %v882
        %v1131 = vmul.f32 %v619, %v892
        %v1132 = vmul.f32 %v620, %v902
        %v1133 = vmul.f32 %v621, %v912
        %v1134 = vmul.f32 %v622, %v922
        %v1135 = vmul.f32 %v623, %v932
        %v1136 = vmul.f32 %v624, %v942
        %v1137 = vmul.f32 %v625, %v952
        %v1138 = vmul.f32 %v626, %v962
        %v1139 = vmul.f32 %v627, %v972
        %v1140 = vmul.f32 %v628, %v982
        %v1141 = vmul.f32 %v629, %v992
        %v1142 = vmul.f32 %v630, %v1002
        %v1143 = vmul.f32 %v631, %v1012
        %v1144 = vmul.f32 %v632, %v1022
        %v1145 = vmul.f32 %v633, %v1032
        %v1146 = vmul.f32 %v634, %v1042
        %v1147 = vmul.f32 %v635, %v1052
        %v1148 = vmul.f32 %v636, %v1062
        %v1149 = vmul.f32 %v637, %v1072
        %v1150 = vmul.f32 %v638, %v1082
        %v1151 = vmul.f32 %v639, %v1092
        %v1152 = vmul.f32 %v640, %v1102
        %v1153 = vmul.f32 %v641, %v1112
        %v1154 = vmul.f32 %v642, %v1122
        %1155 = vst [vmem:[%s273] sm:$0xff] %v1123
        %1156 = vst [vmem:[%s273 + $0x8] sm:$0xff] %v1124
        %1157 = vst [vmem:[%s273 + $0x10] sm:$0xff] %v1125
        %1158 = vst [vmem:[%s273 + $0x18] sm:$0xff] %v1126
        %1159 = vst [vmem:[%s273 + $0x20] sm:$0xff] %v1127
        %1160 = vst [vmem:[%s273 + $0x28] sm:$0xff] %v1128
        %1161 = vst [vmem:[%s273 + $0x30] sm:$0xff] %v1129
        %1162 = vst [vmem:[%s273 + $0x38] sm:$0xff] %v1130
        %1163 = vst [vmem:[%s273 + $0x40] sm:$0xff] %v1131
        %1164 = vst [vmem:[%s273 + $0x48] sm:$0xff] %v1132
        %1165 = vst [vmem:[%s273 + $0x50] sm:$0xff] %v1133
        %1166 = vst [vmem:[%s273 + $0x58] sm:$0xff] %v1134
        %1167 = vst [vmem:[%s273 + $0x60] sm:$0xff] %v1135
        %1168 = vst [vmem:[%s273 + $0x68] sm:$0xff] %v1136
        %1169 = vst [vmem:[%s273 + $0x70] sm:$0xff] %v1137
        %1170 = vst [vmem:[%s273 + $0x78] sm:$0xff] %v1138
        %1171 = vst [vmem:[%s273 + $0x80] sm:$0xff] %v1139
        %1172 = vst [vmem:[%s273 + $0x88] sm:$0xff] %v1140
        %1173 = vst [vmem:[%s273 + $0x90] sm:$0xff] %v1141
        %1174 = vst [vmem:[%s273 + $0x98] sm:$0xff] %v1142
        %1175 = vst [vmem:[%s273 + $0xa0] sm:$0xff] %v1143
        %1176 = vst [vmem:[%s273 + $0xa8] sm:$0xff] %v1144
        %1177 = vst [vmem:[%s273 + $0xb0] sm:$0xff] %v1145
        %1178 = vst [vmem:[%s273 + $0xb8] sm:$0xff] %v1146
        %1179 = vst [vmem:[%s273 + $0xc0] sm:$0xff] %v1147
        %1180 = vst [vmem:[%s273 + $0xc8] sm:$0xff] %v1148
        %1181 = vst [vmem:[%s273 + $0xd0] sm:$0xff] %v1149
        %1182 = vst [vmem:[%s273 + $0xd8] sm:$0xff] %v1150
        %1183 = vst [vmem:[%s273 + $0xe0] sm:$0xff] %v1151
        %1184 = vst [vmem:[%s273 + $0xe8] sm:$0xff] %v1152
        %1185 = vst [vmem:[%s273 + $0xf0] sm:$0xff] %v1153
        %1186 = vst [vmem:[%s273 + $0xf8] sm:$0xff] %v1154
        %1187 = vxpose.xlu0.b32.start [1/16] %v1123, 128
        %1188 = vxpose.xlu0.b32.cont [2/16] %v1124, 128
        %1189 = vxpose.xlu0.b32.cont [3/16] %v1125, 128
        %1190 = vxpose.xlu0.b32.cont [4/16] %v1126, 128
        %1191 = vxpose.xlu0.b32.cont [5/16] %v1127, 128
        %1192 = vxpose.xlu0.b32.cont [6/16] %v1128, 128
        %1193 = vxpose.xlu0.b32.cont [7/16] %v1129, 128
        %1194 = vxpose.xlu0.b32.cont [8/16] %v1130, 128
        %1195 = vxpose.xlu0.b32.cont [9/16] %v1131, 128
        %1196 = vxpose.xlu0.b32.cont [10/16] %v1132, 128
        %1197 = vxpose.xlu0.b32.cont [11/16] %v1133, 128
        %1198 = vxpose.xlu0.b32.cont [12/16] %v1134, 128
        %1199 = vxpose.xlu0.b32.cont [13/16] %v1135, 128
        %1200 = vxpose.xlu0.b32.cont [14/16] %v1136, 128
        %1201 = vxpose.xlu0.b32.cont [15/16] %v1137, 128
        %1202 = vxpose.xlu0.b32.end [16/16] %v1138, 128
        %v1203 = vpop.trf.xlu0
        %v1204 = vpop.trf.xlu0
        %v1205 = vpop.trf.xlu0
        %v1206 = vpop.trf.xlu0
        %v1207 = vpop.trf.xlu0
        %v1208 = vpop.trf.xlu0
        %v1209 = vpop.trf.xlu0
        %v1210 = vpop.trf.xlu0
        %v1211 = vpop.trf.xlu0
        %v1212 = vpop.trf.xlu0
        %v1213 = vpop.trf.xlu0
        %v1214 = vpop.trf.xlu0
        %v1215 = vpop.trf.xlu0
        %v1216 = vpop.trf.xlu0
        %v1217 = vpop.trf.xlu0
        %v1218 = vpop.trf.xlu0
        %1219 = vxpose.xlu0.b32.start [1/16] %v1139, 128
        %1220 = vxpose.xlu0.b32.cont [2/16] %v1140, 128
        %1221 = vxpose.xlu0.b32.cont [3/16] %v1141, 128
        %1222 = vxpose.xlu0.b32.cont [4/16] %v1142, 128
        %1223 = vxpose.xlu0.b32.cont [5/16] %v1143, 128
        %1224 = vxpose.xlu0.b32.cont [6/16] %v1144, 128
        %1225 = vxpose.xlu0.b32.cont [7/16] %v1145, 128
        %1226 = vxpose.xlu0.b32.cont [8/16] %v1146, 128
        %1227 = vxpose.xlu0.b32.cont [9/16] %v1147, 128
        %1228 = vxpose.xlu0.b32.cont [10/16] %v1148, 128
        %1229 = vxpose.xlu0.b32.cont [11/16] %v1149, 128
        %1230 = vxpose.xlu0.b32.cont [12/16] %v1150, 128
        %1231 = vxpose.xlu0.b32.cont [13/16] %v1151, 128
        %1232 = vxpose.xlu0.b32.cont [14/16] %v1152, 128
        %1233 = vxpose.xlu0.b32.cont [15/16] %v1153, 128
        %1234 = vxpose.xlu0.b32.end [16/16] %v1154, 128
        %v1235 = vpop.trf.xlu0
        %v1236 = vpop.trf.xlu0
        %v1237 = vpop.trf.xlu0
        %v1238 = vpop.trf.xlu0
        %v1239 = vpop.trf.xlu0
        %v1240 = vpop.trf.xlu0
        %v1241 = vpop.trf.xlu0
        %v1242 = vpop.trf.xlu0
        %v1243 = vpop.trf.xlu0
        %v1244 = vpop.trf.xlu0
        %v1245 = vpop.trf.xlu0
        %v1246 = vpop.trf.xlu0
        %v1247 = vpop.trf.xlu0
        %v1248 = vpop.trf.xlu0
        %v1249 = vpop.trf.xlu0
        %v1250 = vpop.trf.xlu0
        %1251 = vst [vmem:[%s280] sm:$0xff] %v1203
        %1252 = vst [vmem:[%s280 + $0x8] sm:$0xff] %v1235
        %1253 = vst [vmem:[%s280 + $0x10] sm:$0xff] %v1204
        %1254 = vst [vmem:[%s280 + $0x18] sm:$0xff] %v1236
        %1255 = vst [vmem:[%s280 + $0x20] sm:$0xff] %v1205
        %1256 = vst [vmem:[%s280 + $0x28] sm:$0xff] %v1237
        %1257 = vst [vmem:[%s280 + $0x30] sm:$0xff] %v1206
        %1258 = vst [vmem:[%s280 + $0x38] sm:$0xff] %v1238
        %1259 = vst [vmem:[%s280 + $0x40] sm:$0xff] %v1207
        %1260 = vst [vmem:[%s280 + $0x48] sm:$0xff] %v1239
        %1261 = vst [vmem:[%s280 + $0x50] sm:$0xff] %v1208
        %1262 = vst [vmem:[%s280 + $0x58] sm:$0xff] %v1240
        %1263 = vst [vmem:[%s280 + $0x60] sm:$0xff] %v1209
        %1264 = vst [vmem:[%s280 + $0x68] sm:$0xff] %v1241
        %1265 = vst [vmem:[%s280 + $0x70] sm:$0xff] %v1210
        %1266 = vst [vmem:[%s280 + $0x78] sm:$0xff] %v1242
        %1267 = vst [vmem:[%s280 + $0x80] sm:$0xff] %v1211
        %1268 = vst [vmem:[%s280 + $0x88] sm:$0xff] %v1243
        %1269 = vst [vmem:[%s280 + $0x90] sm:$0xff] %v1212
        %1270 = vst [vmem:[%s280 + $0x98] sm:$0xff] %v1244
        %1271 = vst [vmem:[%s280 + $0xa0] sm:$0xff] %v1213
        %1272 = vst [vmem:[%s280 + $0xa8] sm:$0xff] %v1245
        %1273 = vst [vmem:[%s280 + $0xb0] sm:$0xff] %v1214
        %1274 = vst [vmem:[%s280 + $0xb8] sm:$0xff] %v1246
        %1275 = vst [vmem:[%s280 + $0xc0] sm:$0xff] %v1215
        %1276 = vst [vmem:[%s280 + $0xc8] sm:$0xff] %v1247
        %1277 = vst [vmem:[%s280 + $0xd0] sm:$0xff] %v1216
        %1278 = vst [vmem:[%s280 + $0xd8] sm:$0xff] %v1248
        %1279 = vst [vmem:[%s280 + $0xe0] sm:$0xff] %v1217
        %1280 = vst [vmem:[%s280 + $0xe8] sm:$0xff] %v1249
        %1281 = vst [vmem:[%s280 + $0xf0] sm:$0xff] %v1218
        %1282 = vst [vmem:[%s280 + $0xf8] sm:$0xff] %v1250
        %s1283 = sand.u32 %s103, 1
        %s1284 = scalar_lea.sflag [#allocation4], %s1283
        %s1285 = sand.u32 %s103, 1
        %s1286 = smul.addr %s1285, 256
        %s1287 = scalar_lea.vmem [#allocation7], %s1286
        %s1288 = sand.u32 %s27, 1
        %s1289 = scalar_lea.sflag [#allocation9], %s1288
        %s1290 = sand.u32 %s129, 1
        %s1291 = smul.addr %s1290, 256
        %s1292 = scalar_lea.vmem [#allocation8], %s1291
        %s1293 = sand.u32 %s27, 1
        %s1294 = scalar_lea.sflag [#allocation9], %s1293
        %s1295 = sand.u32 %s155, 1
        %s1296 = smul.addr %s1295, 256
        %s1297 = scalar_lea.vmem [#allocation10], %s1296
        // Predicated region
        $region41: #{tpu_custom_call.1} parent=31 // pred_check
          %p1298 = pneg %p113
        $region42: #{tpu_custom_call.1} parent=31 // pred_check_branch
          %1300 = sbr.rel (%p1298) target = $region44
        $region43: #{tpu_custom_call.1} parent=31 // pred_region
          %s1301 = smul.u32 32, %s27
          %1303 = vsyncadd %s1284, 0
          %s1304 = smul.addr %s1301, 8
          %s1305 = scalar_lea.hbm %s3, %s1304
          %s1306 = sshll.u32 %s1287, 4
          %s1307 = int_to_ptr.vmem [resolvable:$true] %s1306
          %s1308 = sshll.u32 %s1305, 4
          %s1309 = int_to_ptr.hbm [resolvable:$true] %s1308
          %1314 = dma.vmem_to_hbm [thread:$0]  %s1307, 4096, %s1309, %s1284, 128, 128, 8
        $region44: #{tpu_custom_call.1} parent=31 // pred_fallthru
          _
        // Predicated region
        $region45: #{tpu_custom_call.1} parent=31 // pred_check
          %p1315 = pneg %p139
        $region46: #{tpu_custom_call.1} parent=31 // pred_check_branch
          %1317 = sbr.rel (%p1315) target = $region48
        $region47: #{tpu_custom_call.1} parent=31 // pred_region
          %s1318 = smul.u32 32, %s27
          %1320 = vsyncadd %s1289, 0
          %s1321 = smul.addr %s1318, 8
          %s1322 = scalar_lea.hbm %s4, %s1321
          %s1323 = sshll.u32 %s1292, 4
          %s1324 = int_to_ptr.vmem [resolvable:$true] %s1323
          %s1325 = sshll.u32 %s1322, 4
          %s1326 = int_to_ptr.hbm [resolvable:$true] %s1325
          %1331 = dma.vmem_to_hbm [thread:$0]  %s1324, 4096, %s1326, %s1289, 128, 128, 8
        $region48: #{tpu_custom_call.1} parent=31 // pred_fallthru
          _
        // Predicated region
        $region49: #{tpu_custom_call.1} parent=31 // pred_check
          %p1332 = pneg %p165
        $region50: #{tpu_custom_call.1} parent=31 // pred_check_branch
          %1334 = sbr.rel (%p1332) target = $region52
        $region51: #{tpu_custom_call.1} parent=31 // pred_region
          %s1335 = smul.u32 2, %s27
          %1337 = vsyncadd %s1294, 0
          %s1338 = smul.addr %s1335, 8
          %s1339 = scalar_lea.hbm %s5, %s1338
          %s1340 = sshll.u32 %s1297, 4
          %s1341 = int_to_ptr.vmem [resolvable:$true] %s1340
          %s1342 = sshll.u32 %s1339, 4
          %s1343 = int_to_ptr.hbm [resolvable:$true] %s1342
          %1348 = dma.vmem_to_hbm [thread:$0]  %s1341, 4096, %s1343, %s1294, 256, 768, 16
        $region52: #{tpu_custom_call.1} parent=31 // pred_fallthru
          _
      $region32: #{tpu_custom_call.1} parent=5 // pred_fallthru
        _
      %p1349 = scmp.le.s32.totalorder 2, %s22
      // Predicated region
      $region53: #{tpu_custom_call.1} parent=5 // pred_check
        %p1350 = pneg %p1349
      $region54: #{tpu_custom_call.1} parent=5 // pred_check_branch
        %1352 = sbr.rel (%p1350) target = $region56
      $region55: #{tpu_custom_call.1} parent=5 // pred_region
        %s1353 = ssub.s32 %s22, 2
        // Predicated region
        $region57: #{tpu_custom_call.1} parent=55 // pred_check
          %p1354 = pneg %p119
        $region58: #{tpu_custom_call.1} parent=55 // pred_check_branch
          %1356 = sbr.rel (%p1354) target = $region60
        $region59: #{tpu_custom_call.1} parent=55 // pred_region
          %s1357 = sand.u32 %s104, 1
          %s1358 = scalar_lea.sflag [#allocation4], %s1357
          %s1359 = sand.u32 %s104, 1
          %s1360 = smul.addr %s1359, 256
          %s1361 = scalar_lea.vmem [#allocation7], %s1360
          %1363 = dma.done %s1358, 4096
        $region60: #{tpu_custom_call.1} parent=55 // pred_fallthru
          _
        // Predicated region
        $region61: #{tpu_custom_call.1} parent=55 // pred_check
          %p1364 = pneg %p145
        $region62: #{tpu_custom_call.1} parent=55 // pred_check_branch
          %1366 = sbr.rel (%p1364) target = $region64
        $region63: #{tpu_custom_call.1} parent=55 // pred_region
          %s1367 = sand.u32 %s28, 1
          %s1368 = scalar_lea.sflag [#allocation9], %s1367
          %s1369 = sand.u32 %s130, 1
          %s1370 = smul.addr %s1369, 256
          %s1371 = scalar_lea.vmem [#allocation8], %s1370
          %1373 = dma.done %s1368, 4096
        $region64: #{tpu_custom_call.1} parent=55 // pred_fallthru
          _
        // Predicated region
        $region65: #{tpu_custom_call.1} parent=55 // pred_check
          %p1374 = pneg %p171
        $region66: #{tpu_custom_call.1} parent=55 // pred_check_branch
          %1376 = sbr.rel (%p1374) target = $region68
        $region67: #{tpu_custom_call.1} parent=55 // pred_region
          %s1377 = sand.u32 %s28, 1
          %s1378 = scalar_lea.sflag [#allocation9], %s1377
          %s1379 = sand.u32 %s156, 1
          %s1380 = smul.addr %s1379, 256
          %s1381 = scalar_lea.vmem [#allocation10], %s1380
          %1383 = dma.done %s1378, 4096
        $region68: #{tpu_custom_call.1} parent=55 // pred_fallthru
          _
      $region56: #{tpu_custom_call.1} parent=5 // pred_fallthru
        _
    $region6: #{tpu_custom_call.1} parent=1 // loop_footer
      %s26 = sadd.s32 1, %s22
    $region7: #{tpu_custom_call.1} parent=1 // loop_footer_branch
      %21 = sbr.rel target = $region3
    $region8: #{tpu_custom_call.1} parent=1 // loop_exit
      _
    %1384 = vsyncpa [#allocation3], 1
    %s1385 = scalar_lea.sflag [#allocation3], 1
    %1386 = vsyncpa %s1385, 1
    %1387 = vsyncpa [#allocation6], 1
    %1388 = vsyncpa [#allocation4], 1
    %s1389 = scalar_lea.sflag [#allocation4], 1
    %1390 = vsyncpa %s1389, 1
    %1391 = vsyncpa [#allocation9], 1
    %s1392 = scalar_lea.sflag [#allocation9], 1
    %1393 = vsyncpa %s1392, 1

</llo_original>
